<compile_context>
chip_gen: v6e
topology: v6e:2x2x1
jax: 0.10.0
libtpu: 0.0.40
codegen_flags: <defaults>
</compile_context>

<pallas_src>
import functools
import math

import jax
import jax.numpy as jnp
from jax import lax
from jax.experimental import pallas as pl
from jax.experimental.pallas import tpu as pltpu


def _round_up(v, m):
    return ((v + m - 1) // m) * m


def _round_down(v, m):
    return (v // m) * m


def _hw_params():
    """(vmem_limit_cap, multi_tensorcore) for the current TPU generation."""
    vmem_cap = 128 << 20
    try:
        info = pltpu.get_tpu_info()
        vmem_cap = int(getattr(info, "vmem_capacity_bytes", vmem_cap))
    except Exception:
        pass
    vmem_cap = max(64 << 20, vmem_cap)
    # 64 MiB/TC parts (v7x-class) have 2 TensorCores that "parallel" grid axes
    # shard across; 128 MiB parts (v5e/v6e) are single-TC.
    multi_tc = vmem_cap <= (64 << 20)
    return (vmem_cap * 3) // 4, multi_tc


def _vmem_limit(need_bytes, cap):
    return int(min(cap, max(16 << 20, need_bytes)))


def _pick_row_tile(m_rows, row_bytes, budget_bytes, sub, force_split):
    """Largest sublane-aligned row tile fitting the input-tile budget; force
    >=2 grid steps only when there are 2 TensorCores to shard across."""
    if m_rows <= sub:
        return m_rows
    tm = max(sub, _round_down(budget_bytes // max(row_bytes, 1), sub))
    tm = min(tm, _round_up(m_rows, sub))
    if force_split and pl.cdiv(m_rows, tm) < 2:
        tm = max(sub, _round_up(pl.cdiv(m_rows, 2), sub))
    return tm


def _pick_fold(m, n, esize, budget):
    """Fold factor k: pack k consecutive rows into one lane-dense row of
    width k*n.  Any divisor of m is allowed; pick the one that maximizes
    elements-per-vreg-footprint.  k is capped so the segmented-sum matmuls
    stay far from the MXU roofline even on v5e at HIGHEST precision."""
    if n >= 128 or m <= 1:
        return 1

    def eff(c):
        return (m * n) / (_round_up(m // c, 8) * _round_up(c * n, 128))

    best, best_eff = 1, eff(1)
    d = 1
    while d * d <= m:
        if m % d == 0:
            for cand in (d, m // d):
                if cand <= 1 or cand > 32 or cand * n > 2048:
                    continue
                if cand * n * esize * 8 > budget:
                    continue
                e = eff(cand)
                if e > best_eff + 1e-12 or (abs(e - best_eff) <= 1e-12 and cand < best):
                    best, best_eff = cand, e
        d += 1
    return best


# ---------------------------------------------------------------------------
# Kernels
# ---------------------------------------------------------------------------

def _var_block_kernel(x_ref, o_ref, *, n, k, unbiased):
    """Variance over length-n segments laid out contiguously along lanes.

    x_ref: (tm, k*n) input tile (lane-dense when k > 1).
    o_ref: (tm, k)   one variance per segment.
    """
    x = x_ref[...].astype(jnp.float32)
    denom = (n - 1) if unbiased else n
    inv_n = 1.0 / n
    inv_d = (1.0 / denom) if denom > 0 else float("inf")   # n==1 unbiased -> NaN
    if k == 1:
        mean = jnp.sum(x, axis=-1, keepdims=True) * inv_n
        d = x - mean
        var = jnp.sum(d * d, axis=-1, keepdims=True) * inv_d
    else:
        kn = k * n
        # Any per-row constant shift is exact for every segment in that row;
        # the row mean keeps the one-pass form numerically close to two-pass.
        shift = jnp.mean(x, axis=-1, keepdims=True)
        xs = x - shift
        # 0/1 segment-indicator matrix; segmented sums run on the otherwise
        # idle MXU so the big tile stays lane-dense.  One-pass form => only
        # 2 dots and no (tm, k*n)-sized mean broadcast.
        row = lax.broadcasted_iota(jnp.int32, (kn, k), 0)
        lo = lax.broadcasted_iota(jnp.int32, (kn, k), 1) * n
        seg = ((row >= lo) & (row < lo + n)).astype(jnp.float32)
        hi = lax.Precision.HIGHEST
        s1 = jnp.dot(xs, seg, preferred_element_type=jnp.float32, precision=hi)
        s2 = jnp.dot(xs * xs, seg, preferred_element_type=jnp.float32,
                     precision=hi)
        var = (s2 - s1 * s1 * inv_n) * inv_d
    o_ref[...] = var.astype(o_ref.dtype)


def _var_accum_kernel(x_ref, o_ref, shift_ref, sum_ref, sq_ref, *,
                      n, tw, unbiased):
    """Long-W path: shifted sum / sum-of-squares accumulation over W tiles.

    Partial sums are kept lane-wide (tm, 128) so the inner steps are pure VPU
    adds; the single cross-lane reduce happens once in the finalize step."""
    kk = pl.program_id(1)
    last = pl.num_programs(1) - 1
    nblk = tw // 128

    x_raw = x_ref[...].astype(jnp.float32)

    @pl.when(kk == 0)
    def _():
        shift_ref[...] = x_raw[:, 0:1]          # per-row shift (numerics)
        sum_ref[...] = jnp.zeros_like(sum_ref)
        sq_ref[...] = jnp.zeros_like(sq_ref)

    def accumulate(masked):
        x = x_raw - shift_ref[...]
        if masked:
            col = kk * tw + lax.broadcasted_iota(jnp.int32, x.shape, 1)
            x = jnp.where(col < n, x, 0.0)
        ps = x[:, 0:128]
        pq = ps * ps
        for b in range(1, nblk):                # static, lane-block slices
            xb = x[:, b * 128:(b + 1) * 128]
            ps = ps + xb
            pq = pq + xb * xb
        sum_ref[...] += ps
        sq_ref[...] += pq

    if n % tw == 0:
        accumulate(masked=False)                # no per-step mask work
    else:
        @pl.when(kk != last)
        def _():
            accumulate(masked=False)

        @pl.when(kk == last)
        def _():
            accumulate(masked=True)

    @pl.when(kk == last)
    def _():
        denom = (n - 1) if unbiased else n
        inv_d = (1.0 / denom) if denom > 0 else float("inf")
        s = jnp.sum(sum_ref[...], axis=-1, keepdims=True)
        q = jnp.sum(sq_ref[...], axis=-1, keepdims=True)
        var = (q - s * s * (1.0 / n)) * inv_d
        o_ref[...] = var.astype(o_ref.dtype)


def _var_sublane_kernel(x_ref, o_ref, *, n, unbiased):
    """dim != last: reduce over the second-to-last block axis (sublanes),
    keeping the original (lane-dense) layout — no HBM transpose."""
    x = x_ref[...].astype(jnp.float32)          # (tp, n, tq)
    denom = (n - 1) if unbiased else n
    inv_n = 1.0 / n
    inv_d = (1.0 / denom) if denom > 0 else float("inf")
    mean = jnp.sum(x, axis=-2, keepdims=True) * inv_n
    d = x - mean
    var = jnp.sum(d * d, axis=-2, keepdims=True) * inv_d
    o_ref[...] = var.astype(o_ref.dtype)


# ---------------------------------------------------------------------------
# Wrappers
# ---------------------------------------------------------------------------

def _var_last_dim(x2, unbiased, *, max_block_bytes, cap, multi_tc, sub, w_tile):
    """Variance over the last axis of a 2-D (m, n) array -> (m, 1)."""
    m, n = x2.shape
    esize = jnp.dtype(x2.dtype).itemsize
    use_accum = (w_tile is not None) or (n * esize * sub > max_block_bytes)

    if not use_accum:
        k = _pick_fold(m, n, esize, max_block_bytes)
        m_rows = m // k
        width = k * n
        x_in = x2.reshape(m_rows, width) if k > 1 else x2
        tm = _pick_row_tile(m_rows, width * esize, max_block_bytes, sub, multi_tc)
        in_b = tm * width * esize
        out_b = tm * k * esize
        seg_b = width * k * 4 if k > 1 else 0
        # Double-buffered in/out tiles + the in-kernel f32 temporaries
        # (xs, xs*xs) + the segment matrix + headroom.
        need = 2 * in_b + 2 * out_b + 2 * tm * width * 4 + seg_b + (4 << 20)

        out2 = pl.pallas_call(
            functools.partial(_var_block_kernel, n=n, k=k, unbiased=unbiased),
            out_shape=jax.ShapeDtypeStruct((m_rows, k), x2.dtype),
            grid_spec=pltpu.PrefetchScalarGridSpec(
                num_scalar_prefetch=0,
                grid=(pl.cdiv(m_rows, tm),),
                in_specs=[pl.BlockSpec((tm, width), lambda i: (i, 0))],
                out_specs=pl.BlockSpec((tm, k), lambda i: (i, 0)),
            ),
            compiler_params=pltpu.CompilerParams(
                dimension_semantics=("parallel",),
                vmem_limit_bytes=_vmem_limit(need, cap),
            ),
        )(x_in)
        return out2.reshape(m, 1)

    # Long reduction axis: tile W across an "arbitrary" grid axis.
    if w_tile is not None:
        tw = int(w_tile)
        assert tw % 128 == 0, "w_tile must be a multiple of 128"
        tw = min(tw, _round_up(n, 128))
    else:
        tw = min(2048, _round_up(n, 128))
        tw = max(128, _round_down(min(tw, max_block_bytes // (sub * esize)), 128))
    tm = _pick_row_tile(m, tw * esize, max_block_bytes, sub, multi_tc)
    in_b = tm * tw * esize
    need = (2 * in_b + 2 * tm * esize + 2 * tm * tw * 4
            + 3 * tm * 128 * 4 + (4 << 20))

    out2 = pl.pallas_call(
        functools.partial(_var_accum_kernel, n=n, tw=tw, unbiased=unbiased),
        out_shape=jax.ShapeDtypeStruct((m, 1), x2.dtype),
        grid_spec=pltpu.PrefetchScalarGridSpec(
            num_scalar_prefetch=0,
            grid=(pl.cdiv(m, tm), pl.cdiv(n, tw)),
            in_specs=[pl.BlockSpec((tm, tw), lambda i, kk: (i, kk))],
            out_specs=pl.BlockSpec((tm, 1), lambda i, kk: (i, 0)),
            scratch_shapes=[pltpu.VMEM((tm, 1), jnp.float32),
                            pltpu.VMEM((tm, 128), jnp.float32),
                            pltpu.VMEM((tm, 128), jnp.float32)],
        ),
        compiler_params=pltpu.CompilerParams(
            dimension_semantics=("parallel", "arbitrary"),
            vmem_limit_bytes=_vmem_limit(need, cap),
        ),
    )(x2)
    return out2


def var_layer(x, dim=-1, unbiased=True, *, max_block_bytes=None, w_tile=None):
    """Pallas TPU equivalent of VarLayer(dim).forward(x): x.var(dim, keepdim=True)."""
    ndim = x.ndim
    if dim < 0:
        dim += ndim
    assert 0 <= dim < ndim
    n = x.shape[dim]
    assert n >= 1

    esize = jnp.dtype(x.dtype).itemsize
    sub = max(8, 32 // esize)                   # sublane packing per dtype
    cap, multi_tc = _hw_params()
    if max_block_bytes is None:
        # Input-tile cap sized so tiles + f32 temporaries + double-buffering
        # stay within ~3/4 of this generation's VMEM.
        max_block_bytes = max(4 << 20, ((cap - (8 << 20)) * esize) // (2 * esize + 10))

    out_shape = tuple(1 if a == dim else s for a, s in enumerate(x.shape))

    if dim == ndim - 1:
        # Canonical FeatureExtractorV3 case (NCHW, dim=3): reduce over lanes.
        m = math.prod(x.shape[:-1])
        out2 = _var_last_dim(x.reshape(m, n), unbiased,
                             max_block_bytes=max_block_bytes, cap=cap,
                             multi_tc=multi_tc, sub=sub, w_tile=w_tile)
        return out2.reshape(out_shape)

    # dim != last: keep the original layout and reduce along sublanes in-kernel
    # (no HBM transpose round-trip).
    P = math.prod(x.shape[:dim])
    Q = math.prod(x.shape[dim + 1:])
    tq_min = Q if Q <= 128 else 128
    sublane_ok = (w_tile is None) and (n * tq_min * esize * min(P, sub) <= max_block_bytes)

    if sublane_ok:
        x3 = x.reshape(P, n, Q)
        if Q <= 128:
            tq = Q
        else:
            tq = _round_down(max_block_bytes // max(n * esize * min(P, sub), 1), 128)
            tq = max(128, min(tq, _round_up(Q, 128)))
        tp = _pick_row_tile(P, n * tq * esize, max_block_bytes, sub, multi_tc)
        in_b = tp * n * tq * esize
        out_b = tp * tq * esize
        need = 2 * in_b + 2 * out_b + 2 * tp * n * tq * 4 + (4 << 20)

        out3 = pl.pallas_call(
            functools.partial(_var_sublane_kernel, n=n, unbiased=unbiased),
            out_shape=jax.ShapeDtypeStruct((P, 1, Q), x.dtype),
            grid_spec=pltpu.PrefetchScalarGridSpec(
                num_scalar_prefetch=0,
                grid=(pl.cdiv(P, tp), pl.cdiv(Q, tq)),
                in_specs=[pl.BlockSpec((tp, n, tq), lambda i, j: (i, 0, j))],
                out_specs=pl.BlockSpec((tp, 1, tq), lambda i, j: (i, 0, j)),
            ),
            compiler_params=pltpu.CompilerParams(
                dimension_semantics=("parallel", "parallel"),
                vmem_limit_bytes=_vmem_limit(need, cap),
            ),
        )(x3)
        return out3.reshape(out_shape)

    # Fallback for non-last dims whose per-block footprint is too big for the
    # sublane path (or when w_tile forces the accumulator): one XLA transpose,
    # then the last-dim kernels.
    # TODO(synk): an n-tiled sublane accumulator would avoid this HBM round-trip.
    perm = [a for a in range(ndim) if a != dim] + [dim]
    x_t = jnp.transpose(x, perm)
    m = math.prod(x_t.shape[:-1])
    out2 = _var_last_dim(x_t.reshape(m, n), unbiased,
                         max_block_bytes=max_block_bytes, cap=cap,
                         multi_tc=multi_tc, sub=sub, w_tile=w_tile)
    out_t = out2.reshape(x_t.shape[:-1] + (1,))
    inv_perm = [0] * ndim
    for pos, a in enumerate(perm):
        inv_perm[a] = pos
    return jnp.transpose(out_t, inv_perm).reshape(out_shape)


if __name__ == "__main__":
    key = jax.random.PRNGKey(0)

    # EEG-like NCHW tensor: (batch, channels, electrodes, time); VarLayer(dim=3).
    B, C, H, W = 2, 4, 16, 16
    x = jax.random.normal(key, (B, C, H, W), dtype=jnp.float32)
    out = jax.block_until_ready(var_layer(x, dim=3))
    ref = jnp.var(x, axis=3, keepdims=True, ddof=1)
    assert out.shape == (B, C, H, 1), out.shape
    assert jnp.allclose(out, ref, atol=1e-5, rtol=1e-4), \
        float(jnp.max(jnp.abs(out - ref)))

    # Leading rows not divisible by lcm(n,128)/n: fold factor relaxes to a
    # divisor of m (k=5 here) instead of falling back to width-16 tiles.
    x2 = jax.random.normal(jax.random.PRNGKey(1), (2, 3, 5, 16),
                           dtype=jnp.float32)
    out2 = jax.block_until_ready(var_layer(x2, dim=3))
    ref2 = jnp.var(x2, axis=3, keepdims=True, ddof=1)
    assert out2.shape == (2, 3, 5, 1)
    assert jnp.allclose(out2, ref2, atol=1e-5, rtol=1e-4)

    # Long-time-axis accumulator path (shifted one-pass, W tiled on the grid);
    # the +3.0 offset exercises the per-row shift's numerical benefit.
    x3 = jax.random.normal(jax.random.PRNGKey(2), (2, 2, 8, 256),
                           dtype=jnp.float32) + 3.0
    out3 = jax.block_until_ready(var_layer(x3, dim=3, w_tile=128))
    ref3 = jnp.var(x3, axis=3, keepdims=True, ddof=1)
    assert out3.shape == (2, 2, 8, 1)
    assert jnp.allclose(out3, ref3, atol=1e-4, rtol=1e-3)

    # Non-last reduction dim -> in-kernel sublane reduction (no HBM transpose).
    out4 = jax.block_until_ready(var_layer(x, dim=2))
    ref4 = jnp.var(x, axis=2, keepdims=True, ddof=1)
    assert out4.shape == (B, C, 1, W)
    assert jnp.allclose(out4, ref4, atol=1e-5, rtol=1e-4)

    # bf16 input exercising dtype-aware sublane alignment (tm multiple of 16).
    x5 = jax.random.normal(jax.random.PRNGKey(3), (4, 8, 16, 16),
                           dtype=jnp.bfloat16)
    out5 = jax.block_until_ready(var_layer(x5, dim=3))
    ref5 = jnp.var(x5.astype(jnp.float32), axis=3, keepdims=True, ddof=1)
    assert out5.shape == (4, 8, 16, 1)
    assert jnp.allclose(out5.astype(jnp.float32), ref5, atol=5e-3, rtol=2e-2)

    print("KERNEL_OK")
</pallas_src>

<mosaic_0001>
module attributes {stable_mosaic.version = 11 : i64} {
  func.func @_var_block_kernel(%arg0: i32, %arg1: memref<16x128xf32, #tpu.memory_space<vmem>>, %arg2: memref<16x8xf32, #tpu.memory_space<vmem>>) attributes {dimension_semantics = [#tpu.dimension_semantics<parallel>], iteration_bounds = array<i64: 1>, scalar_prefetch = 0 : i64, scratch_operands = 0 : i64, tpu.core_type = #tpu.core_type<tc>, window_params = [{transform_indices = @transform_0, window_bounds = array<i64: 16, 128>}, {transform_indices = @transform_1, window_bounds = array<i64: 16, 8>}]} {
    %c0 = arith.constant 0 : index
    %c0_0 = arith.constant 0 : index
    %0 = vector.load %arg1[%c0, %c0_0] : memref<16x128xf32, #tpu.memory_space<vmem>>, vector<16x128xf32>
    %cst = arith.constant dense<0.000000e+00> : vector<16xf32>
    %1 = vector.multi_reduction <add>, %0, %cst [1] : vector<16x128xf32> to vector<16xf32>
    %2 = vector.shape_cast %1 : vector<16xf32> to vector<16x1xf32>
    %cst_1 = arith.constant 1.280000e+02 : f32
    %3 = vector.broadcast %cst_1 : f32 to vector<16x1xf32>
    %4 = arith.divf %2, %3 : vector<16x1xf32>
    %5 = vector.broadcast %4 : vector<16x1xf32> to vector<16x128xf32>
    %6 = arith.subf %0, %5 : vector<16x128xf32>
    %7 = tpu.iota {dimensions = array<i32: 0>} : vector<128x8xi32>
    %8 = tpu.iota {dimensions = array<i32: 1>} : vector<128x8xi32>
    %c16_i32 = arith.constant 16 : i32
    %9 = vector.broadcast %c16_i32 : i32 to vector<128x8xi32>
    %10 = arith.muli %8, %9 : vector<128x8xi32>
    %11 = arith.cmpi sge, %7, %10 : vector<128x8xi32>
    %c16_i32_2 = arith.constant 16 : i32
    %12 = vector.broadcast %c16_i32_2 : i32 to vector<128x8xi32>
    %13 = arith.addi %10, %12 : vector<128x8xi32>
    %14 = arith.cmpi slt, %7, %13 : vector<128x8xi32>
    %15 = arith.andi %11, %14 : vector<128x8xi1>
    %16 = arith.extui %15 : vector<128x8xi1> to vector<128x8xi32>
    %17 = arith.sitofp %16 : vector<128x8xi32> to vector<128x8xf32>
    %cst_3 = arith.constant dense<0.000000e+00> : vector<16x8xf32>
    %18 = tpu.matmul %6, %17, %cst_3 {dimension_numbers = #tpu.dot_dimension_numbers<[1], [0], [0], [1], [0, 0, 1, 1], [], []>, precision = #tpu.contract_precision<fp32>} : vector<16x128xf32>, vector<128x8xf32>, vector<16x8xf32> -> vector<16x8xf32>
    %19 = arith.mulf %6, %6 : vector<16x128xf32>
    %cst_4 = arith.constant dense<0.000000e+00> : vector<16x8xf32>
    %20 = tpu.matmul %19, %17, %cst_4 {dimension_numbers = #tpu.dot_dimension_numbers<[1], [0], [0], [1], [0, 0, 1, 1], [], []>, precision = #tpu.contract_precision<fp32>} : vector<16x128xf32>, vector<128x8xf32>, vector<16x8xf32> -> vector<16x8xf32>
    %21 = arith.mulf %18, %18 : vector<16x8xf32>
    %cst_5 = arith.constant 6.250000e-02 : f32
    %22 = vector.broadcast %cst_5 : f32 to vector<16x8xf32>
    %23 = arith.mulf %21, %22 : vector<16x8xf32>
    %24 = arith.subf %20, %23 : vector<16x8xf32>
    %cst_6 = arith.constant 0.0666666701 : f32
    %25 = vector.broadcast %cst_6 : f32 to vector<16x8xf32>
    %26 = arith.mulf %24, %25 : vector<16x8xf32>
    %c0_7 = arith.constant 0 : index
    %c0_8 = arith.constant 0 : index
    %27 = vector.load %arg2[%c0_7, %c0_8] : memref<16x8xf32, #tpu.memory_space<vmem>>, vector<16x8xf32>
    tpu.vector_store %arg2[%c0_7, %c0_8], %26 {strides = array<i32>} : memref<16x8xf32, #tpu.memory_space<vmem>>, vector<16x8xf32>,
    return
  }
  func.func @transform_0(%arg0: i32) -> (i32, i32) {
    %c0_i32 = arith.constant 0 : i32
    %c0_i32_0 = arith.constant 0 : i32
    return %arg0, %c0_i32 : i32, i32
  }
  func.func @transform_1(%arg0: i32) -> (i32, i32) {
    %c0_i32 = arith.constant 0 : i32
    %c0_i32_0 = arith.constant 0 : i32
    return %arg0, %c0_i32 : i32, i32
  }
}

</mosaic_0001>

<llo_original>
// kernel: tpu_custom_call.1
$region0: #{tpu_custom_call.1}
  #allocation0 [shape = 'u32[]', space=smem, size = 0x4, offset = 0x4, fixed_abs, tag = 'smem constant byte address 0x4 - core index']
  #allocation1 [shape = 'u32[144,128]{1,0:T(1,128)}', space=vmem, size = 0x12000, scoped, tag = 'internal scratch']
  %s0 = inlined_call_operand.hbm [shape: f32[16,128], index: 0, kind: input, shape index: {}]
  %s1 = inlined_call_operand.vmem [shape: f32[16,8], index: 1, kind: output, shape index: {}]
  %s2 = sld [smem:[#allocation0]]
  $region18: #{tpu_custom_call.1} parent=0
    _
  %s4 = ssub.s32 1, %s2
  %s5 = scalar_select 0, %s4, %s2
  $region1: #{tpu_custom_call.1} parent=0
    #allocation2 [shape = 'u8[8192]{0}', space=vmem, size = 0x2000, scoped, tag = 'input window, operand 0, single buffered']
    #allocation3 [shape = 's32[1]{0}', space=sflag, size = 0x4, scoped, tag = 'scoped memory for tpu_custom_call.1']
    %6 = vsyncpa [#allocation3], 0
    // Predicated region
    $region2: #{tpu_custom_call.1} parent=1 // pred_check
      _
    $region3: #{tpu_custom_call.1} parent=1 // pred_check_branch
      %8 = sbr.rel (0) target = $region5
    $region4: #{tpu_custom_call.1} parent=1 // pred_region
      %s10 = ssub.s32 256, 256
      %11 = vsyncadd [#allocation3], %s10
      %s12 = sshll.u32 [#allocation2], 4
      %s13 = int_to_ptr.vmem [resolvable:$true] %s12
      %18 = dma.hbm_to_vmem [thread:$0]  %s0, 256, %s13, [#allocation3], 128, 128, 8
    $region5: #{tpu_custom_call.1} parent=1 // pred_fallthru
      _
    // Predicated region
    $region6: #{tpu_custom_call.1} parent=1 // pred_check
      _
    $region7: #{tpu_custom_call.1} parent=1 // pred_check_branch
      %20 = sbr.rel (0) target = $region9
    $region8: #{tpu_custom_call.1} parent=1 // pred_region
      %21 = dma.done [#allocation3], 256
    $region9: #{tpu_custom_call.1} parent=1 // pred_fallthru
      _
    %v22 = vld [vmem:[#allocation2] sm:$0xff]
    %v23 = vld [vmem:[#allocation2 + $0x8] sm:$0xff]
    %24 = vadd.xlane.f32.xlu0 %v22
    %v25 = vpop.xlane.xlu0 %24
    %26 = vadd.xlane.f32.xlu0 %v23
    %v27 = vpop.xlane.xlu0 %26
    %v28 = vrcp.pop 128.0
    %v29 = vmul.f32 %v25, %v28
    %v30 = vmul.f32 %v27, %v28
    %v31 = vsub.f32 %v22, %v29
    %v32 = vsub.f32 %v23, %v30
    %v33 = vlaneseq
    %v34 = vshrl.u32 %v33, 7
    %v35 = vadd.s32 %v34, 8
    %v36 = vadd.s32 %v34, 16
    %v37 = vadd.s32 %v34, 24
    %v38 = vadd.s32 %v34, 32
    %v39 = vadd.s32 %v34, 40
    %v40 = vadd.s32 %v34, 48
    %v41 = vadd.s32 %v34, 56
    %v42 = vadd.s32 %v34, 64
    %v43 = vadd.s32 %v34, 72
    %v44 = vadd.s32 %v34, 80
    %v45 = vadd.s32 %v34, 88
    %v46 = vadd.s32 %v34, 96
    %v47 = vadd.s32 %v34, 104
    %v48 = vadd.s32 %v34, 112
    %v49 = vadd.s32 %v34, 120
    %v50 = vlaneseq
    %v51 = vand.u32 %v50, 127
    %v52 = vmul.u32 %v51, 16
    %vm53 = vcmp.ge.s32.totalorder %v34, %v52
    %vm54 = vcmp.ge.s32.totalorder %v35, %v52
    %vm55 = vcmp.ge.s32.totalorder %v36, %v52
    %vm56 = vcmp.ge.s32.totalorder %v37, %v52
    %vm57 = vcmp.ge.s32.totalorder %v38, %v52
    %vm58 = vcmp.ge.s32.totalorder %v39, %v52
    %vm59 = vcmp.ge.s32.totalorder %v40, %v52
    %vm60 = vcmp.ge.s32.totalorder %v41, %v52
    %vm61 = vcmp.ge.s32.totalorder %v42, %v52
    %vm62 = vcmp.ge.s32.totalorder %v43, %v52
    %vm63 = vcmp.ge.s32.totalorder %v44, %v52
    %vm64 = vcmp.ge.s32.totalorder %v45, %v52
    %vm65 = vcmp.ge.s32.totalorder %v46, %v52
    %vm66 = vcmp.ge.s32.totalorder %v47, %v52
    %vm67 = vcmp.ge.s32.totalorder %v48, %v52
    %vm68 = vcmp.ge.s32.totalorder %v49, %v52
    %v69 = vadd.s32 %v52, 16
    %vm70 = vcmp.lt.s32.totalorder %v34, %v69
    %vm71 = vcmp.lt.s32.totalorder %v35, %v69
    %vm72 = vcmp.lt.s32.totalorder %v36, %v69
    %vm73 = vcmp.lt.s32.totalorder %v37, %v69
    %vm74 = vcmp.lt.s32.totalorder %v38, %v69
    %vm75 = vcmp.lt.s32.totalorder %v39, %v69
    %vm76 = vcmp.lt.s32.totalorder %v40, %v69
    %vm77 = vcmp.lt.s32.totalorder %v41, %v69
    %vm78 = vcmp.lt.s32.totalorder %v42, %v69
    %vm79 = vcmp.lt.s32.totalorder %v43, %v69
    %vm80 = vcmp.lt.s32.totalorder %v44, %v69
    %vm81 = vcmp.lt.s32.totalorder %v45, %v69
    %vm82 = vcmp.lt.s32.totalorder %v46, %v69
    %vm83 = vcmp.lt.s32.totalorder %v47, %v69
    %vm84 = vcmp.lt.s32.totalorder %v48, %v69
    %vm85 = vcmp.lt.s32.totalorder %v49, %v69
    %vm86 = vmand %vm53, %vm70
    %vm87 = vmand %vm54, %vm71
    %vm88 = vmand %vm55, %vm72
    %vm89 = vmand %vm56, %vm73
    %vm90 = vmand %vm57, %vm74
    %vm91 = vmand %vm58, %vm75
    %vm92 = vmand %vm59, %vm76
    %vm93 = vmand %vm60, %vm77
    %vm94 = vmand %vm61, %vm78
    %vm95 = vmand %vm62, %vm79
    %vm96 = vmand %vm63, %vm80
    %vm97 = vmand %vm64, %vm81
    %vm98 = vmand %vm65, %vm82
    %vm99 = vmand %vm66, %vm83
    %vm100 = vmand %vm67, %vm84
    %vm101 = vmand %vm68, %vm85
    %v102 = vsel %vm86, 1, 0
    %v103 = vsel %vm87, 1, 0
    %v104 = vsel %vm88, 1, 0
    %v105 = vsel %vm89, 1, 0
    %v106 = vsel %vm90, 1, 0
    %v107 = vsel %vm91, 1, 0
    %v108 = vsel %vm92, 1, 0
    %v109 = vsel %vm93, 1, 0
    %v110 = vsel %vm94, 1, 0
    %v111 = vsel %vm95, 1, 0
    %v112 = vsel %vm96, 1, 0
    %v113 = vsel %vm97, 1, 0
    %v114 = vsel %vm98, 1, 0
    %v115 = vsel %vm99, 1, 0
    %v116 = vsel %vm100, 1, 0
    %v117 = vsel %vm101, 1, 0
    %v118 = vcvt.s32.f32 %v102
    %v119 = vcvt.s32.f32 %v103
    %v120 = vcvt.s32.f32 %v104
    %v121 = vcvt.s32.f32 %v105
    %v122 = vcvt.s32.f32 %v106
    %v123 = vcvt.s32.f32 %v107
    %v124 = vcvt.s32.f32 %v108
    %v125 = vcvt.s32.f32 %v109
    %v126 = vcvt.s32.f32 %v110
    %v127 = vcvt.s32.f32 %v111
    %v128 = vcvt.s32.f32 %v112
    %v129 = vcvt.s32.f32 %v113
    %v130 = vcvt.s32.f32 %v114
    %v131 = vcvt.s32.f32 %v115
    %v132 = vcvt.s32.f32 %v116
    %v133 = vcvt.s32.f32 %v117
    %134 = vmatprep.subr.mxu0 0.0
    %v135 = vand.u32 %v133, 4294901760
    %136 = vmatpush1.msra.mxu0 %v135
    %137 = vmatprep.subr.mxu0 0.0
    %v138 = vand.u32 %v132, 4294901760
    %139 = vmatpush1.msra.mxu0 %v138
    %140 = vmatprep.subr.mxu0 0.0
    %v141 = vand.u32 %v131, 4294901760
    %142 = vmatpush1.msra.mxu0 %v141
    %143 = vmatprep.subr.mxu0 0.0
    %v144 = vand.u32 %v130, 4294901760
    %145 = vmatpush1.msra.mxu0 %v144
    %146 = vmatprep.subr.mxu0 0.0
    %v147 = vand.u32 %v129, 4294901760
    %148 = vmatpush1.msra.mxu0 %v147
    %149 = vmatprep.subr.mxu0 0.0
    %v150 = vand.u32 %v128, 4294901760
    %151 = vmatpush1.msra.mxu0 %v150
    %152 = vmatprep.subr.mxu0 0.0
    %v153 = vand.u32 %v127, 4294901760
    %154 = vmatpush1.msra.mxu0 %v153
    %155 = vmatprep.subr.mxu0 0.0
    %v156 = vand.u32 %v126, 4294901760
    %157 = vmatpush1.msra.mxu0 %v156
    %158 = vmatprep.subr.mxu0 0.0
    %v159 = vand.u32 %v125, 4294901760
    %160 = vmatpush1.msra.mxu0 %v159
    %161 = vmatprep.subr.mxu0 0.0
    %v162 = vand.u32 %v124, 4294901760
    %163 = vmatpush1.msra.mxu0 %v162
    %164 = vmatprep.subr.mxu0 0.0
    %v165 = vand.u32 %v123, 4294901760
    %166 = vmatpush1.msra.mxu0 %v165
    %167 = vmatprep.subr.mxu0 0.0
    %v168 = vand.u32 %v122, 4294901760
    %169 = vmatpush1.msra.mxu0 %v168
    %170 = vmatprep.subr.mxu0 0.0
    %v171 = vand.u32 %v121, 4294901760
    %172 = vmatpush1.msra.mxu0 %v171
    %173 = vmatprep.subr.mxu0 0.0
    %v174 = vand.u32 %v120, 4294901760
    %175 = vmatpush1.msra.mxu0 %v174
    %176 = vmatprep.subr.mxu0 0.0
    %v177 = vand.u32 %v119, 4294901760
    %178 = vmatpush1.msra.mxu0 %v177
    %179 = vmatprep.subr.mxu0 0.0
    %v180 = vand.u32 %v118, 4294901760
    %181 = vmatpush1.msra.mxu0 %v180
    %182 = vmatprep.subr.mxu0 0.0
    %183 = vmatpush2.msra.mxu0 0.0
    %184 = vmatprep.subr.mxu0 0.0
    %185 = vmatpush2.msra.mxu0 0.0
    %186 = vmatprep.subr.mxu0 0.0
    %187 = vmatpush2.msra.mxu0 0.0
    %188 = vmatprep.subr.mxu0 0.0
    %189 = vmatpush2.msra.mxu0 0.0
    %190 = vmatprep.subr.mxu0 0.0
    %191 = vmatpush2.msra.mxu0 0.0
    %192 = vmatprep.subr.mxu0 0.0
    %193 = vmatpush2.msra.mxu0 0.0
    %194 = vmatprep.subr.mxu0 0.0
    %195 = vmatpush2.msra.mxu0 0.0
    %196 = vmatprep.subr.mxu0 0.0
    %197 = vmatpush2.msra.mxu0 0.0
    %198 = vmatprep.subr.mxu0 0.0
    %199 = vmatpush2.msra.mxu0 0.0
    %200 = vmatprep.subr.mxu0 0.0
    %201 = vmatpush2.msra.mxu0 0.0
    %202 = vmatprep.subr.mxu0 0.0
    %203 = vmatpush2.msra.mxu0 0.0
    %204 = vmatprep.subr.mxu0 0.0
    %205 = vmatpush2.msra.mxu0 0.0
    %206 = vmatprep.subr.mxu0 0.0
    %207 = vmatpush2.msra.mxu0 0.0
    %208 = vmatprep.subr.mxu0 0.0
    %209 = vmatpush2.msra.mxu0 0.0
    %210 = vmatprep.subr.mxu0 0.0
    %211 = vmatpush2.msra.mxu0 0.0
    %212 = vmatprep.subr.mxu0 0.0
    %213 = vmatpush2.msra.mxu0 0.0
    %214 = vmatprep.mubr.f32.mxu0 0.0
    %v215 = vand.u32 %v31, 4294901760
    %v216 = vsub.f32 %v31, %v215
    %v217 = vand.u32 %v216, 4294901760
    %v218 = vsub.f32 %v216, %v217
    %v219 = vand.u32 %v218, 4294901760
    %220 = vmatmul.mubr.f32.gmra.mxu0 %v219
    %v221 = vpop.f32.mrf.mxu0
    %v222 = vadd.f32 0.0, %v221
    %v223 = vpop.f32.mrf.mxu0
    %224 = vmatprep.mubr.f32.mxu0 0.0
    %v225 = vand.u32 %v32, 4294901760
    %v226 = vsub.f32 %v32, %v225
    %v227 = vand.u32 %v226, 4294901760
    %v228 = vsub.f32 %v226, %v227
    %v229 = vand.u32 %v228, 4294901760
    %230 = vmatmul.mubr.f32.gmra.mxu0 %v229
    %v231 = vpop.f32.mrf.mxu0
    %v232 = vadd.f32 0.0, %v231
    %v233 = vpop.f32.mrf.mxu0
    %234 = vdwg.mxu0
    %235 = vmatprep.subr.mxu0 0.0
    %v236 = vand.u32 %v133, 4294901760
    %v237 = vsub.f32 %v133, %v236
    %v238 = vand.u32 %v237, 4294901760
    %v239 = vsub.f32 %v237, %v238
    %v240 = vand.u32 %v239, 4294901760
    %241 = vmatpush1.msra.mxu0 %v240
    %242 = vmatprep.subr.mxu0 0.0
    %v243 = vand.u32 %v132, 4294901760
    %v244 = vsub.f32 %v132, %v243
    %v245 = vand.u32 %v244, 4294901760
    %v246 = vsub.f32 %v244, %v245
    %v247 = vand.u32 %v246, 4294901760
    %248 = vmatpush1.msra.mxu0 %v247
    %249 = vmatprep.subr.mxu0 0.0
    %v250 = vand.u32 %v131, 4294901760
    %v251 = vsub.f32 %v131, %v250
    %v252 = vand.u32 %v251, 4294901760
    %v253 = vsub.f32 %v251, %v252
    %v254 = vand.u32 %v253, 4294901760
    %255 = vmatpush1.msra.mxu0 %v254
    %256 = vmatprep.subr.mxu0 0.0
    %v257 = vand.u32 %v130, 4294901760
    %v258 = vsub.f32 %v130, %v257
    %v259 = vand.u32 %v258, 4294901760
    %v260 = vsub.f32 %v258, %v259
    %v261 = vand.u32 %v260, 4294901760
    %262 = vmatpush1.msra.mxu0 %v261
    %263 = vmatprep.subr.mxu0 0.0
    %v264 = vand.u32 %v129, 4294901760
    %v265 = vsub.f32 %v129, %v264
    %v266 = vand.u32 %v265, 4294901760
    %v267 = vsub.f32 %v265, %v266
    %v268 = vand.u32 %v267, 4294901760
    %269 = vmatpush1.msra.mxu0 %v268
    %270 = vmatprep.subr.mxu0 0.0
    %v271 = vand.u32 %v128, 4294901760
    %v272 = vsub.f32 %v128, %v271
    %v273 = vand.u32 %v272, 4294901760
    %v274 = vsub.f32 %v272, %v273
    %v275 = vand.u32 %v274, 4294901760
    %276 = vmatpush1.msra.mxu0 %v275
    %277 = vmatprep.subr.mxu0 0.0
    %v278 = vand.u32 %v127, 4294901760
    %v279 = vsub.f32 %v127, %v278
    %v280 = vand.u32 %v279, 4294901760
    %v281 = vsub.f32 %v279, %v280
    %v282 = vand.u32 %v281, 4294901760
    %283 = vmatpush1.msra.mxu0 %v282
    %284 = vmatprep.subr.mxu0 0.0
    %v285 = vand.u32 %v126, 4294901760
    %v286 = vsub.f32 %v126, %v285
    %v287 = vand.u32 %v286, 4294901760
    %v288 = vsub.f32 %v286, %v287
    %v289 = vand.u32 %v288, 4294901760
    %290 = vmatpush1.msra.mxu0 %v289
    %291 = vmatprep.subr.mxu0 0.0
    %v292 = vand.u32 %v125, 4294901760
    %v293 = vsub.f32 %v125, %v292
    %v294 = vand.u32 %v293, 4294901760
    %v295 = vsub.f32 %v293, %v294
    %v296 = vand.u32 %v295, 4294901760
    %297 = vmatpush1.msra.mxu0 %v296
    %298 = vmatprep.subr.mxu0 0.0
    %v299 = vand.u32 %v124, 4294901760
    %v300 = vsub.f32 %v124, %v299
    %v301 = vand.u32 %v300, 4294901760
    %v302 = vsub.f32 %v300, %v301
    %v303 = vand.u32 %v302, 4294901760
    %304 = vmatpush1.msra.mxu0 %v303
    %305 = vmatprep.subr.mxu0 0.0
    %v306 = vand.u32 %v123, 4294901760
    %v307 = vsub.f32 %v123, %v306
    %v308 = vand.u32 %v307, 4294901760
    %v309 = vsub.f32 %v307, %v308
    %v310 = vand.u32 %v309, 4294901760
    %311 = vmatpush1.msra.mxu0 %v310
    %312 = vmatprep.subr.mxu0 0.0
    %v313 = vand.u32 %v122, 4294901760
    %v314 = vsub.f32 %v122, %v313
    %v315 = vand.u32 %v314, 4294901760
    %v316 = vsub.f32 %v314, %v315
    %v317 = vand.u32 %v316, 4294901760
    %318 = vmatpush1.msra.mxu0 %v317
    %319 = vmatprep.subr.mxu0 0.0
    %v320 = vand.u32 %v121, 4294901760
    %v321 = vsub.f32 %v121, %v320
    %v322 = vand.u32 %v321, 4294901760
    %v323 = vsub.f32 %v321, %v322
    %v324 = vand.u32 %v323, 4294901760
    %325 = vmatpush1.msra.mxu0 %v324
    %326 = vmatprep.subr.mxu0 0.0
    %v327 = vand.u32 %v120, 4294901760
    %v328 = vsub.f32 %v120, %v327
    %v329 = vand.u32 %v328, 4294901760
    %v330 = vsub.f32 %v328, %v329
    %v331 = vand.u32 %v330, 4294901760
    %332 = vmatpush1.msra.mxu0 %v331
    %333 = vmatprep.subr.mxu0 0.0
    %v334 = vand.u32 %v119, 4294901760
    %v335 = vsub.f32 %v119, %v334
    %v336 = vand.u32 %v335, 4294901760
    %v337 = vsub.f32 %v335, %v336
    %v338 = vand.u32 %v337, 4294901760
    %339 = vmatpush1.msra.mxu0 %v338
    %340 = vmatprep.subr.mxu0 0.0
    %v341 = vand.u32 %v118, 4294901760
    %v342 = vsub.f32 %v118, %v341
    %v343 = vand.u32 %v342, 4294901760
    %v344 = vsub.f32 %v342, %v343
    %v345 = vand.u32 %v344, 4294901760
    %346 = vmatpush1.msra.mxu0 %v345
    %347 = vmatprep.subr.mxu0 0.0
    %348 = vmatpush2.msra.mxu0 0.0
    %349 = vmatprep.subr.mxu0 0.0
    %350 = vmatpush2.msra.mxu0 0.0
    %351 = vmatprep.subr.mxu0 0.0
    %352 = vmatpush2.msra.mxu0 0.0
    %353 = vmatprep.subr.mxu0 0.0
    %354 = vmatpush2.msra.mxu0 0.0
    %355 = vmatprep.subr.mxu0 0.0
    %356 = vmatpush2.msra.mxu0 0.0
    %357 = vmatprep.subr.mxu0 0.0
    %358 = vmatpush2.msra.mxu0 0.0
    %359 = vmatprep.subr.mxu0 0.0
    %360 = vmatpush2.msra.mxu0 0.0
    %361 = vmatprep.subr.mxu0 0.0
    %362 = vmatpush2.msra.mxu0 0.0
    %363 = vmatprep.subr.mxu0 0.0
    %364 = vmatpush2.msra.mxu0 0.0
    %365 = vmatprep.subr.mxu0 0.0
    %366 = vmatpush2.msra.mxu0 0.0
    %367 = vmatprep.subr.mxu0 0.0
    %368 = vmatpush2.msra.mxu0 0.0
    %369 = vmatprep.subr.mxu0 0.0
    %370 = vmatpush2.msra.mxu0 0.0
    %371 = vmatprep.subr.mxu0 0.0
    %372 = vmatpush2.msra.mxu0 0.0
    %373 = vmatprep.subr.mxu0 0.0
    %374 = vmatpush2.msra.mxu0 0.0
    %375 = vmatprep.subr.mxu0 0.0
    %376 = vmatpush2.msra.mxu0 0.0
    %377 = vmatprep.subr.mxu0 0.0
    %378 = vmatpush2.msra.mxu0 0.0
    %379 = vmatprep.mubr.f32.mxu0 0.0
    %v380 = vand.u32 %v31, 4294901760
    %381 = vmatmul.mubr.f32.gmra.mxu0 %v380
    %v382 = vpop.f32.mrf.mxu0
    %v383 = vadd.f32 %v222, %v382
    %v384 = vpop.f32.mrf.mxu0
    %385 = vmatprep.mubr.f32.mxu0 0.0
    %v386 = vand.u32 %v32, 4294901760
    %387 = vmatmul.mubr.f32.gmra.mxu0 %v386
    %v388 = vpop.f32.mrf.mxu0
    %v389 = vadd.f32 %v232, %v388
    %v390 = vpop.f32.mrf.mxu0
    %391 = vdwg.mxu0
    %392 = vmatprep.subr.mxu0 0.0
    %v393 = vand.u32 %v133, 4294901760
    %v394 = vsub.f32 %v133, %v393
    %395 = vmatpush1.msra.mxu0 %v394
    %396 = vmatprep.subr.mxu0 0.0
    %v397 = vand.u32 %v132, 4294901760
    %v398 = vsub.f32 %v132, %v397
    %399 = vmatpush1.msra.mxu0 %v398
    %400 = vmatprep.subr.mxu0 0.0
    %v401 = vand.u32 %v131, 4294901760
    %v402 = vsub.f32 %v131, %v401
    %403 = vmatpush1.msra.mxu0 %v402
    %404 = vmatprep.subr.mxu0 0.0
    %v405 = vand.u32 %v130, 4294901760
    %v406 = vsub.f32 %v130, %v405
    %407 = vmatpush1.msra.mxu0 %v406
    %408 = vmatprep.subr.mxu0 0.0
    %v409 = vand.u32 %v129, 4294901760
    %v410 = vsub.f32 %v129, %v409
    %411 = vmatpush1.msra.mxu0 %v410
    %412 = vmatprep.subr.mxu0 0.0
    %v413 = vand.u32 %v128, 4294901760
    %v414 = vsub.f32 %v128, %v413
    %415 = vmatpush1.msra.mxu0 %v414
    %416 = vmatprep.subr.mxu0 0.0
    %v417 = vand.u32 %v127, 4294901760
    %v418 = vsub.f32 %v127, %v417
    %419 = vmatpush1.msra.mxu0 %v418
    %420 = vmatprep.subr.mxu0 0.0
    %v421 = vand.u32 %v126, 4294901760
    %v422 = vsub.f32 %v126, %v421
    %423 = vmatpush1.msra.mxu0 %v422
    %424 = vmatprep.subr.mxu0 0.0
    %v425 = vand.u32 %v125, 4294901760
    %v426 = vsub.f32 %v125, %v425
    %427 = vmatpush1.msra.mxu0 %v426
    %428 = vmatprep.subr.mxu0 0.0
    %v429 = vand.u32 %v124, 4294901760
    %v430 = vsub.f32 %v124, %v429
    %431 = vmatpush1.msra.mxu0 %v430
    %432 = vmatprep.subr.mxu0 0.0
    %v433 = vand.u32 %v123, 4294901760
    %v434 = vsub.f32 %v123, %v433
    %435 = vmatpush1.msra.mxu0 %v434
    %436 = vmatprep.subr.mxu0 0.0
    %v437 = vand.u32 %v122, 4294901760
    %v438 = vsub.f32 %v122, %v437
    %439 = vmatpush1.msra.mxu0 %v438
    %440 = vmatprep.subr.mxu0 0.0
    %v441 = vand.u32 %v121, 4294901760
    %v442 = vsub.f32 %v121, %v441
    %443 = vmatpush1.msra.mxu0 %v442
    %444 = vmatprep.subr.mxu0 0.0
    %v445 = vand.u32 %v120, 4294901760
    %v446 = vsub.f32 %v120, %v445
    %447 = vmatpush1.msra.mxu0 %v446
    %448 = vmatprep.subr.mxu0 0.0
    %v449 = vand.u32 %v119, 4294901760
    %v450 = vsub.f32 %v119, %v449
    %451 = vmatpush1.msra.mxu0 %v450
    %452 = vmatprep.subr.mxu0 0.0
    %v453 = vand.u32 %v118, 4294901760
    %v454 = vsub.f32 %v118, %v453
    %455 = vmatpush1.msra.mxu0 %v454
    %456 = vmatprep.subr.mxu0 0.0
    %457 = vmatpush2.msra.mxu0 0.0
    %458 = vmatprep.subr.mxu0 0.0
    %459 = vmatpush2.msra.mxu0 0.0
    %460 = vmatprep.subr.mxu0 0.0
    %461 = vmatpush2.msra.mxu0 0.0
    %462 = vmatprep.subr.mxu0 0.0
    %463 = vmatpush2.msra.mxu0 0.0
    %464 = vmatprep.subr.mxu0 0.0
    %465 = vmatpush2.msra.mxu0 0.0
    %466 = vmatprep.subr.mxu0 0.0
    %467 = vmatpush2.msra.mxu0 0.0
    %468 = vmatprep.subr.mxu0 0.0
    %469 = vmatpush2.msra.mxu0 0.0
    %470 = vmatprep.subr.mxu0 0.0
    %471 = vmatpush2.msra.mxu0 0.0
    %472 = vmatprep.subr.mxu0 0.0
    %473 = vmatpush2.msra.mxu0 0.0
    %474 = vmatprep.subr.mxu0 0.0
    %475 = vmatpush2.msra.mxu0 0.0
    %476 = vmatprep.subr.mxu0 0.0
    %477 = vmatpush2.msra.mxu0 0.0
    %478 = vmatprep.subr.mxu0 0.0
    %479 = vmatpush2.msra.mxu0 0.0
    %480 = vmatprep.subr.mxu0 0.0
    %481 = vmatpush2.msra.mxu0 0.0
    %482 = vmatprep.subr.mxu0 0.0
    %483 = vmatpush2.msra.mxu0 0.0
    %484 = vmatprep.subr.mxu0 0.0
    %485 = vmatpush2.msra.mxu0 0.0
    %486 = vmatprep.subr.mxu0 0.0
    %487 = vmatpush2.msra.mxu0 0.0
    %488 = vmatprep.mubr.f32.mxu0 0.0
    %v489 = vand.u32 %v31, 4294901760
    %v490 = vsub.f32 %v31, %v489
    %491 = vmatmul.mubr.f32.gmra.mxu0 %v490
    %v492 = vpop.f32.mrf.mxu0
    %v493 = vadd.f32 %v383, %v492
    %v494 = vpop.f32.mrf.mxu0
    %495 = vmatprep.mubr.f32.mxu0 0.0
    %v496 = vand.u32 %v32, 4294901760
    %v497 = vsub.f32 %v32, %v496
    %498 = vmatmul.mubr.f32.gmra.mxu0 %v497
    %v499 = vpop.f32.mrf.mxu0
    %v500 = vadd.f32 %v389, %v499
    %v501 = vpop.f32.mrf.mxu0
    %502 = vdwg.mxu0
    %503 = vmatprep.subr.mxu0 0.0
    %v504 = vand.u32 %v133, 4294901760
    %505 = vmatpush1.msra.mxu0 %v504
    %506 = vmatprep.subr.mxu0 0.0
    %v507 = vand.u32 %v132, 4294901760
    %508 = vmatpush1.msra.mxu0 %v507
    %509 = vmatprep.subr.mxu0 0.0
    %v510 = vand.u32 %v131, 4294901760
    %511 = vmatpush1.msra.mxu0 %v510
    %512 = vmatprep.subr.mxu0 0.0
    %v513 = vand.u32 %v130, 4294901760
    %514 = vmatpush1.msra.mxu0 %v513
    %515 = vmatprep.subr.mxu0 0.0
    %v516 = vand.u32 %v129, 4294901760
    %517 = vmatpush1.msra.mxu0 %v516
    %518 = vmatprep.subr.mxu0 0.0
    %v519 = vand.u32 %v128, 4294901760
    %520 = vmatpush1.msra.mxu0 %v519
    %521 = vmatprep.subr.mxu0 0.0
    %v522 = vand.u32 %v127, 4294901760
    %523 = vmatpush1.msra.mxu0 %v522
    %524 = vmatprep.subr.mxu0 0.0
    %v525 = vand.u32 %v126, 4294901760
    %526 = vmatpush1.msra.mxu0 %v525
    %527 = vmatprep.subr.mxu0 0.0
    %v528 = vand.u32 %v125, 4294901760
    %529 = vmatpush1.msra.mxu0 %v528
    %530 = vmatprep.subr.mxu0 0.0
    %v531 = vand.u32 %v124, 4294901760
    %532 = vmatpush1.msra.mxu0 %v531
    %533 = vmatprep.subr.mxu0 0.0
    %v534 = vand.u32 %v123, 4294901760
    %535 = vmatpush1.msra.mxu0 %v534
    %536 = vmatprep.subr.mxu0 0.0
    %v537 = vand.u32 %v122, 4294901760
    %538 = vmatpush1.msra.mxu0 %v537
    %539 = vmatprep.subr.mxu0 0.0
    %v540 = vand.u32 %v121, 4294901760
    %541 = vmatpush1.msra.mxu0 %v540
    %542 = vmatprep.subr.mxu0 0.0
    %v543 = vand.u32 %v120, 4294901760
    %544 = vmatpush1.msra.mxu0 %v543
    %545 = vmatprep.subr.mxu0 0.0
    %v546 = vand.u32 %v119, 4294901760
    %547 = vmatpush1.msra.mxu0 %v546
    %548 = vmatprep.subr.mxu0 0.0
    %v549 = vand.u32 %v118, 4294901760
    %550 = vmatpush1.msra.mxu0 %v549
    %551 = vmatprep.subr.mxu0 0.0
    %552 = vmatpush2.msra.mxu0 0.0
    %553 = vmatprep.subr.mxu0 0.0
    %554 = vmatpush2.msra.mxu0 0.0
    %555 = vmatprep.subr.mxu0 0.0
    %556 = vmatpush2.msra.mxu0 0.0
    %557 = vmatprep.subr.mxu0 0.0
    %558 = vmatpush2.msra.mxu0 0.0
    %559 = vmatprep.subr.mxu0 0.0
    %560 = vmatpush2.msra.mxu0 0.0
    %561 = vmatprep.subr.mxu0 0.0
    %562 = vmatpush2.msra.mxu0 0.0
    %563 = vmatprep.subr.mxu0 0.0
    %564 = vmatpush2.msra.mxu0 0.0
    %565 = vmatprep.subr.mxu0 0.0
    %566 = vmatpush2.msra.mxu0 0.0
    %567 = vmatprep.subr.mxu0 0.0
    %568 = vmatpush2.msra.mxu0 0.0
    %569 = vmatprep.subr.mxu0 0.0
    %570 = vmatpush2.msra.mxu0 0.0
    %571 = vmatprep.subr.mxu0 0.0
    %572 = vmatpush2.msra.mxu0 0.0
    %573 = vmatprep.subr.mxu0 0.0
    %574 = vmatpush2.msra.mxu0 0.0
    %575 = vmatprep.subr.mxu0 0.0
    %576 = vmatpush2.msra.mxu0 0.0
    %577 = vmatprep.subr.mxu0 0.0
    %578 = vmatpush2.msra.mxu0 0.0
    %579 = vmatprep.subr.mxu0 0.0
    %580 = vmatpush2.msra.mxu0 0.0
    %581 = vmatprep.subr.mxu0 0.0
    %582 = vmatpush2.msra.mxu0 0.0
    %583 = vmatprep.mubr.f32.mxu0 0.0
    %v584 = vand.u32 %v31, 4294901760
    %v585 = vsub.f32 %v31, %v584
    %v586 = vand.u32 %v585, 4294901760
    %587 = vmatmul.mubr.f32.gmra.mxu0 %v586
    %v588 = vpop.f32.mrf.mxu0
    %v589 = vadd.f32 %v493, %v588
    %v590 = vpop.f32.mrf.mxu0
    %591 = vmatprep.mubr.f32.mxu0 0.0
    %v592 = vand.u32 %v32, 4294901760
    %v593 = vsub.f32 %v32, %v592
    %v594 = vand.u32 %v593, 4294901760
    %595 = vmatmul.mubr.f32.gmra.mxu0 %v594
    %v596 = vpop.f32.mrf.mxu0
    %v597 = vadd.f32 %v500, %v596
    %v598 = vpop.f32.mrf.mxu0
    %599 = vdwg.mxu0
    %600 = vmatprep.subr.mxu0 0.0
    %v601 = vand.u32 %v133, 4294901760
    %v602 = vsub.f32 %v133, %v601
    %v603 = vand.u32 %v602, 4294901760
    %604 = vmatpush1.msra.mxu0 %v603
    %605 = vmatprep.subr.mxu0 0.0
    %v606 = vand.u32 %v132, 4294901760
    %v607 = vsub.f32 %v132, %v606
    %v608 = vand.u32 %v607, 4294901760
    %609 = vmatpush1.msra.mxu0 %v608
    %610 = vmatprep.subr.mxu0 0.0
    %v611 = vand.u32 %v131, 4294901760
    %v612 = vsub.f32 %v131, %v611
    %v613 = vand.u32 %v612, 4294901760
    %614 = vmatpush1.msra.mxu0 %v613
    %615 = vmatprep.subr.mxu0 0.0
    %v616 = vand.u32 %v130, 4294901760
    %v617 = vsub.f32 %v130, %v616
    %v618 = vand.u32 %v617, 4294901760
    %619 = vmatpush1.msra.mxu0 %v618
    %620 = vmatprep.subr.mxu0 0.0
    %v621 = vand.u32 %v129, 4294901760
    %v622 = vsub.f32 %v129, %v621
    %v623 = vand.u32 %v622, 4294901760
    %624 = vmatpush1.msra.mxu0 %v623
    %625 = vmatprep.subr.mxu0 0.0
    %v626 = vand.u32 %v128, 4294901760
    %v627 = vsub.f32 %v128, %v626
    %v628 = vand.u32 %v627, 4294901760
    %629 = vmatpush1.msra.mxu0 %v628
    %630 = vmatprep.subr.mxu0 0.0
    %v631 = vand.u32 %v127, 4294901760
    %v632 = vsub.f32 %v127, %v631
    %v633 = vand.u32 %v632, 4294901760
    %634 = vmatpush1.msra.mxu0 %v633
    %635 = vmatprep.subr.mxu0 0.0
    %v636 = vand.u32 %v126, 4294901760
    %v637 = vsub.f32 %v126, %v636
    %v638 = vand.u32 %v637, 4294901760
    %639 = vmatpush1.msra.mxu0 %v638
    %640 = vmatprep.subr.mxu0 0.0
    %v641 = vand.u32 %v125, 4294901760
    %v642 = vsub.f32 %v125, %v641
    %v643 = vand.u32 %v642, 4294901760
    %644 = vmatpush1.msra.mxu0 %v643
    %645 = vmatprep.subr.mxu0 0.0
    %v646 = vand.u32 %v124, 4294901760
    %v647 = vsub.f32 %v124, %v646
    %v648 = vand.u32 %v647, 4294901760
    %649 = vmatpush1.msra.mxu0 %v648
    %650 = vmatprep.subr.mxu0 0.0
    %v651 = vand.u32 %v123, 4294901760
    %v652 = vsub.f32 %v123, %v651
    %v653 = vand.u32 %v652, 4294901760
    %654 = vmatpush1.msra.mxu0 %v653
    %655 = vmatprep.subr.mxu0 0.0
    %v656 = vand.u32 %v122, 4294901760
    %v657 = vsub.f32 %v122, %v656
    %v658 = vand.u32 %v657, 4294901760
    %659 = vmatpush1.msra.mxu0 %v658
    %660 = vmatprep.subr.mxu0 0.0
    %v661 = vand.u32 %v121, 4294901760
    %v662 = vsub.f32 %v121, %v661
    %v663 = vand.u32 %v662, 4294901760
    %664 = vmatpush1.msra.mxu0 %v663
    %665 = vmatprep.subr.mxu0 0.0
    %v666 = vand.u32 %v120, 4294901760
    %v667 = vsub.f32 %v120, %v666
    %v668 = vand.u32 %v667, 4294901760
    %669 = vmatpush1.msra.mxu0 %v668
    %670 = vmatprep.subr.mxu0 0.0
    %v671 = vand.u32 %v119, 4294901760
    %v672 = vsub.f32 %v119, %v671
    %v673 = vand.u32 %v672, 4294901760
    %674 = vmatpush1.msra.mxu0 %v673
    %675 = vmatprep.subr.mxu0 0.0
    %v676 = vand.u32 %v118, 4294901760
    %v677 = vsub.f32 %v118, %v676
    %v678 = vand.u32 %v677, 4294901760
    %679 = vmatpush1.msra.mxu0 %v678
    %680 = vmatprep.subr.mxu0 0.0
    %681 = vmatpush2.msra.mxu0 0.0
    %682 = vmatprep.subr.mxu0 0.0
    %683 = vmatpush2.msra.mxu0 0.0
    %684 = vmatprep.subr.mxu0 0.0
    %685 = vmatpush2.msra.mxu0 0.0
    %686 = vmatprep.subr.mxu0 0.0
    %687 = vmatpush2.msra.mxu0 0.0
    %688 = vmatprep.subr.mxu0 0.0
    %689 = vmatpush2.msra.mxu0 0.0
    %690 = vmatprep.subr.mxu0 0.0
    %691 = vmatpush2.msra.mxu0 0.0
    %692 = vmatprep.subr.mxu0 0.0
    %693 = vmatpush2.msra.mxu0 0.0
    %694 = vmatprep.subr.mxu0 0.0
    %695 = vmatpush2.msra.mxu0 0.0
    %696 = vmatprep.subr.mxu0 0.0
    %697 = vmatpush2.msra.mxu0 0.0
    %698 = vmatprep.subr.mxu0 0.0
    %699 = vmatpush2.msra.mxu0 0.0
    %700 = vmatprep.subr.mxu0 0.0
    %701 = vmatpush2.msra.mxu0 0.0
    %702 = vmatprep.subr.mxu0 0.0
    %703 = vmatpush2.msra.mxu0 0.0
    %704 = vmatprep.subr.mxu0 0.0
    %705 = vmatpush2.msra.mxu0 0.0
    %706 = vmatprep.subr.mxu0 0.0
    %707 = vmatpush2.msra.mxu0 0.0
    %708 = vmatprep.subr.mxu0 0.0
    %709 = vmatpush2.msra.mxu0 0.0
    %710 = vmatprep.subr.mxu0 0.0
    %711 = vmatpush2.msra.mxu0 0.0
    %712 = vmatprep.mubr.f32.mxu0 0.0
    %v713 = vand.u32 %v31, 4294901760
    %714 = vmatmul.mubr.f32.gmra.mxu0 %v713
    %v715 = vpop.f32.mrf.mxu0
    %v716 = vadd.f32 %v589, %v715
    %v717 = vpop.f32.mrf.mxu0
    %718 = vmatprep.mubr.f32.mxu0 0.0
    %v719 = vand.u32 %v32, 4294901760
    %720 = vmatmul.mubr.f32.gmra.mxu0 %v719
    %v721 = vpop.f32.mrf.mxu0
    %v722 = vadd.f32 %v597, %v721
    %v723 = vpop.f32.mrf.mxu0
    %724 = vdwg.mxu0
    %725 = vmatprep.subr.mxu0 0.0
    %v726 = vand.u32 %v133, 4294901760
    %727 = vmatpush1.msra.mxu0 %v726
    %728 = vmatprep.subr.mxu0 0.0
    %v729 = vand.u32 %v132, 4294901760
    %730 = vmatpush1.msra.mxu0 %v729
    %731 = vmatprep.subr.mxu0 0.0
    %v732 = vand.u32 %v131, 4294901760
    %733 = vmatpush1.msra.mxu0 %v732
    %734 = vmatprep.subr.mxu0 0.0
    %v735 = vand.u32 %v130, 4294901760
    %736 = vmatpush1.msra.mxu0 %v735
    %737 = vmatprep.subr.mxu0 0.0
    %v738 = vand.u32 %v129, 4294901760
    %739 = vmatpush1.msra.mxu0 %v738
    %740 = vmatprep.subr.mxu0 0.0
    %v741 = vand.u32 %v128, 4294901760
    %742 = vmatpush1.msra.mxu0 %v741
    %743 = vmatprep.subr.mxu0 0.0
    %v744 = vand.u32 %v127, 4294901760
    %745 = vmatpush1.msra.mxu0 %v744
    %746 = vmatprep.subr.mxu0 0.0
    %v747 = vand.u32 %v126, 4294901760
    %748 = vmatpush1.msra.mxu0 %v747
    %749 = vmatprep.subr.mxu0 0.0
    %v750 = vand.u32 %v125, 4294901760
    %751 = vmatpush1.msra.mxu0 %v750
    %752 = vmatprep.subr.mxu0 0.0
    %v753 = vand.u32 %v124, 4294901760
    %754 = vmatpush1.msra.mxu0 %v753
    %755 = vmatprep.subr.mxu0 0.0
    %v756 = vand.u32 %v123, 4294901760
    %757 = vmatpush1.msra.mxu0 %v756
    %758 = vmatprep.subr.mxu0 0.0
    %v759 = vand.u32 %v122, 4294901760
    %760 = vmatpush1.msra.mxu0 %v759
    %761 = vmatprep.subr.mxu0 0.0
    %v762 = vand.u32 %v121, 4294901760
    %763 = vmatpush1.msra.mxu0 %v762
    %764 = vmatprep.subr.mxu0 0.0
    %v765 = vand.u32 %v120, 4294901760
    %766 = vmatpush1.msra.mxu0 %v765
    %767 = vmatprep.subr.mxu0 0.0
    %v768 = vand.u32 %v119, 4294901760
    %769 = vmatpush1.msra.mxu0 %v768
    %770 = vmatprep.subr.mxu0 0.0
    %v771 = vand.u32 %v118, 4294901760
    %772 = vmatpush1.msra.mxu0 %v771
    %773 = vmatprep.subr.mxu0 0.0
    %774 = vmatpush2.msra.mxu0 0.0
    %775 = vmatprep.subr.mxu0 0.0
    %776 = vmatpush2.msra.mxu0 0.0
    %777 = vmatprep.subr.mxu0 0.0
    %778 = vmatpush2.msra.mxu0 0.0
    %779 = vmatprep.subr.mxu0 0.0
    %780 = vmatpush2.msra.mxu0 0.0
    %781 = vmatprep.subr.mxu0 0.0
    %782 = vmatpush2.msra.mxu0 0.0
    %783 = vmatprep.subr.mxu0 0.0
    %784 = vmatpush2.msra.mxu0 0.0
    %785 = vmatprep.subr.mxu0 0.0
    %786 = vmatpush2.msra.mxu0 0.0
    %787 = vmatprep.subr.mxu0 0.0
    %788 = vmatpush2.msra.mxu0 0.0
    %789 = vmatprep.subr.mxu0 0.0
    %790 = vmatpush2.msra.mxu0 0.0
    %791 = vmatprep.subr.mxu0 0.0
    %792 = vmatpush2.msra.mxu0 0.0
    %793 = vmatprep.subr.mxu0 0.0
    %794 = vmatpush2.msra.mxu0 0.0
    %795 = vmatprep.subr.mxu0 0.0
    %796 = vmatpush2.msra.mxu0 0.0
    %797 = vmatprep.subr.mxu0 0.0
    %798 = vmatpush2.msra.mxu0 0.0
    %799 = vmatprep.subr.mxu0 0.0
    %800 = vmatpush2.msra.mxu0 0.0
    %801 = vmatprep.subr.mxu0 0.0
    %802 = vmatpush2.msra.mxu0 0.0
    %803 = vmatprep.subr.mxu0 0.0
    %804 = vmatpush2.msra.mxu0 0.0
    %805 = vmatprep.mubr.f32.mxu0 0.0
    %v806 = vand.u32 %v31, 4294901760
    %807 = vmatmul.mubr.f32.gmra.mxu0 %v806
    %v808 = vpop.f32.mrf.mxu0
    %v809 = vadd.f32 %v716, %v808
    %v810 = vpop.f32.mrf.mxu0
    %811 = vmatprep.mubr.f32.mxu0 0.0
    %v812 = vand.u32 %v32, 4294901760
    %813 = vmatmul.mubr.f32.gmra.mxu0 %v812
    %v814 = vpop.f32.mrf.mxu0
    %v815 = vadd.f32 %v722, %v814
    %v816 = vpop.f32.mrf.mxu0
    %817 = vdwg.mxu0
    %v818 = vmul.f32 %v31, %v31
    %v819 = vmul.f32 %v32, %v32
    %820 = vmatprep.subr.mxu0 0.0
    %v821 = vand.u32 %v133, 4294901760
    %822 = vmatpush1.msra.mxu0 %v821
    %823 = vmatprep.subr.mxu0 0.0
    %v824 = vand.u32 %v132, 4294901760
    %825 = vmatpush1.msra.mxu0 %v824
    %826 = vmatprep.subr.mxu0 0.0
    %v827 = vand.u32 %v131, 4294901760
    %828 = vmatpush1.msra.mxu0 %v827
    %829 = vmatprep.subr.mxu0 0.0
    %v830 = vand.u32 %v130, 4294901760
    %831 = vmatpush1.msra.mxu0 %v830
    %832 = vmatprep.subr.mxu0 0.0
    %v833 = vand.u32 %v129, 4294901760
    %834 = vmatpush1.msra.mxu0 %v833
    %835 = vmatprep.subr.mxu0 0.0
    %v836 = vand.u32 %v128, 4294901760
    %837 = vmatpush1.msra.mxu0 %v836
    %838 = vmatprep.subr.mxu0 0.0
    %v839 = vand.u32 %v127, 4294901760
    %840 = vmatpush1.msra.mxu0 %v839
    %841 = vmatprep.subr.mxu0 0.0
    %v842 = vand.u32 %v126, 4294901760
    %843 = vmatpush1.msra.mxu0 %v842
    %844 = vmatprep.subr.mxu0 0.0
    %v845 = vand.u32 %v125, 4294901760
    %846 = vmatpush1.msra.mxu0 %v845
    %847 = vmatprep.subr.mxu0 0.0
    %v848 = vand.u32 %v124, 4294901760
    %849 = vmatpush1.msra.mxu0 %v848
    %850 = vmatprep.subr.mxu0 0.0
    %v851 = vand.u32 %v123, 4294901760
    %852 = vmatpush1.msra.mxu0 %v851
    %853 = vmatprep.subr.mxu0 0.0
    %v854 = vand.u32 %v122, 4294901760
    %855 = vmatpush1.msra.mxu0 %v854
    %856 = vmatprep.subr.mxu0 0.0
    %v857 = vand.u32 %v121, 4294901760
    %858 = vmatpush1.msra.mxu0 %v857
    %859 = vmatprep.subr.mxu0 0.0
    %v860 = vand.u32 %v120, 4294901760
    %861 = vmatpush1.msra.mxu0 %v860
    %862 = vmatprep.subr.mxu0 0.0
    %v863 = vand.u32 %v119, 4294901760
    %864 = vmatpush1.msra.mxu0 %v863
    %865 = vmatprep.subr.mxu0 0.0
    %v866 = vand.u32 %v118, 4294901760
    %867 = vmatpush1.msra.mxu0 %v866
    %868 = vmatprep.subr.mxu0 0.0
    %869 = vmatpush2.msra.mxu0 0.0
    %870 = vmatprep.subr.mxu0 0.0
    %871 = vmatpush2.msra.mxu0 0.0
    %872 = vmatprep.subr.mxu0 0.0
    %873 = vmatpush2.msra.mxu0 0.0
    %874 = vmatprep.subr.mxu0 0.0
    %875 = vmatpush2.msra.mxu0 0.0
    %876 = vmatprep.subr.mxu0 0.0
    %877 = vmatpush2.msra.mxu0 0.0
    %878 = vmatprep.subr.mxu0 0.0
    %879 = vmatpush2.msra.mxu0 0.0
    %880 = vmatprep.subr.mxu0 0.0
    %881 = vmatpush2.msra.mxu0 0.0
    %882 = vmatprep.subr.mxu0 0.0
    %883 = vmatpush2.msra.mxu0 0.0
    %884 = vmatprep.subr.mxu0 0.0
    %885 = vmatpush2.msra.mxu0 0.0
    %886 = vmatprep.subr.mxu0 0.0
    %887 = vmatpush2.msra.mxu0 0.0
    %888 = vmatprep.subr.mxu0 0.0
    %889 = vmatpush2.msra.mxu0 0.0
    %890 = vmatprep.subr.mxu0 0.0
    %891 = vmatpush2.msra.mxu0 0.0
    %892 = vmatprep.subr.mxu0 0.0
    %893 = vmatpush2.msra.mxu0 0.0
    %894 = vmatprep.subr.mxu0 0.0
    %895 = vmatpush2.msra.mxu0 0.0
    %896 = vmatprep.subr.mxu0 0.0
    %897 = vmatpush2.msra.mxu0 0.0
    %898 = vmatprep.subr.mxu0 0.0
    %899 = vmatpush2.msra.mxu0 0.0
    %900 = vmatprep.mubr.f32.mxu0 0.0
    %v901 = vand.u32 %v818, 4294901760
    %v902 = vsub.f32 %v818, %v901
    %v903 = vand.u32 %v902, 4294901760
    %v904 = vsub.f32 %v902, %v903
    %v905 = vand.u32 %v904, 4294901760
    %906 = vmatmul.mubr.f32.gmra.mxu0 %v905
    %v907 = vpop.f32.mrf.mxu0
    %v908 = vadd.f32 0.0, %v907
    %v909 = vpop.f32.mrf.mxu0
    %910 = vmatprep.mubr.f32.mxu0 0.0
    %v911 = vand.u32 %v819, 4294901760
    %v912 = vsub.f32 %v819, %v911
    %v913 = vand.u32 %v912, 4294901760
    %v914 = vsub.f32 %v912, %v913
    %v915 = vand.u32 %v914, 4294901760
    %916 = vmatmul.mubr.f32.gmra.mxu0 %v915
    %v917 = vpop.f32.mrf.mxu0
    %v918 = vadd.f32 0.0, %v917
    %v919 = vpop.f32.mrf.mxu0
    %920 = vdwg.mxu0
    %921 = vmatprep.subr.mxu0 0.0
    %v922 = vand.u32 %v133, 4294901760
    %v923 = vsub.f32 %v133, %v922
    %v924 = vand.u32 %v923, 4294901760
    %v925 = vsub.f32 %v923, %v924
    %v926 = vand.u32 %v925, 4294901760
    %927 = vmatpush1.msra.mxu0 %v926
    %928 = vmatprep.subr.mxu0 0.0
    %v929 = vand.u32 %v132, 4294901760
    %v930 = vsub.f32 %v132, %v929
    %v931 = vand.u32 %v930, 4294901760
    %v932 = vsub.f32 %v930, %v931
    %v933 = vand.u32 %v932, 4294901760
    %934 = vmatpush1.msra.mxu0 %v933
    %935 = vmatprep.subr.mxu0 0.0
    %v936 = vand.u32 %v131, 4294901760
    %v937 = vsub.f32 %v131, %v936
    %v938 = vand.u32 %v937, 4294901760
    %v939 = vsub.f32 %v937, %v938
    %v940 = vand.u32 %v939, 4294901760
    %941 = vmatpush1.msra.mxu0 %v940
    %942 = vmatprep.subr.mxu0 0.0
    %v943 = vand.u32 %v130, 4294901760
    %v944 = vsub.f32 %v130, %v943
    %v945 = vand.u32 %v944, 4294901760
    %v946 = vsub.f32 %v944, %v945
    %v947 = vand.u32 %v946, 4294901760
    %948 = vmatpush1.msra.mxu0 %v947
    %949 = vmatprep.subr.mxu0 0.0
    %v950 = vand.u32 %v129, 4294901760
    %v951 = vsub.f32 %v129, %v950
    %v952 = vand.u32 %v951, 4294901760
    %v953 = vsub.f32 %v951, %v952
    %v954 = vand.u32 %v953, 4294901760
    %955 = vmatpush1.msra.mxu0 %v954
    %956 = vmatprep.subr.mxu0 0.0
    %v957 = vand.u32 %v128, 4294901760
    %v958 = vsub.f32 %v128, %v957
    %v959 = vand.u32 %v958, 4294901760
    %v960 = vsub.f32 %v958, %v959
    %v961 = vand.u32 %v960, 4294901760
    %962 = vmatpush1.msra.mxu0 %v961
    %963 = vmatprep.subr.mxu0 0.0
    %v964 = vand.u32 %v127, 4294901760
    %v965 = vsub.f32 %v127, %v964
    %v966 = vand.u32 %v965, 4294901760
    %v967 = vsub.f32 %v965, %v966
    %v968 = vand.u32 %v967, 4294901760
    %969 = vmatpush1.msra.mxu0 %v968
    %970 = vmatprep.subr.mxu0 0.0
    %v971 = vand.u32 %v126, 4294901760
    %v972 = vsub.f32 %v126, %v971
    %v973 = vand.u32 %v972, 4294901760
    %v974 = vsub.f32 %v972, %v973
    %v975 = vand.u32 %v974, 4294901760
    %976 = vmatpush1.msra.mxu0 %v975
    %977 = vmatprep.subr.mxu0 0.0
    %v978 = vand.u32 %v125, 4294901760
    %v979 = vsub.f32 %v125, %v978
    %v980 = vand.u32 %v979, 4294901760
    %v981 = vsub.f32 %v979, %v980
    %v982 = vand.u32 %v981, 4294901760
    %983 = vmatpush1.msra.mxu0 %v982
    %984 = vmatprep.subr.mxu0 0.0
    %v985 = vand.u32 %v124, 4294901760
    %v986 = vsub.f32 %v124, %v985
    %v987 = vand.u32 %v986, 4294901760
    %v988 = vsub.f32 %v986, %v987
    %v989 = vand.u32 %v988, 4294901760
    %990 = vmatpush1.msra.mxu0 %v989
    %991 = vmatprep.subr.mxu0 0.0
    %v992 = vand.u32 %v123, 4294901760
    %v993 = vsub.f32 %v123, %v992
    %v994 = vand.u32 %v993, 4294901760
    %v995 = vsub.f32 %v993, %v994
    %v996 = vand.u32 %v995, 4294901760
    %997 = vmatpush1.msra.mxu0 %v996
    %998 = vmatprep.subr.mxu0 0.0
    %v999 = vand.u32 %v122, 4294901760
    %v1000 = vsub.f32 %v122, %v999
    %v1001 = vand.u32 %v1000, 4294901760
    %v1002 = vsub.f32 %v1000, %v1001
    %v1003 = vand.u32 %v1002, 4294901760
    %1004 = vmatpush1.msra.mxu0 %v1003
    %1005 = vmatprep.subr.mxu0 0.0
    %v1006 = vand.u32 %v121, 4294901760
    %v1007 = vsub.f32 %v121, %v1006
    %v1008 = vand.u32 %v1007, 4294901760
    %v1009 = vsub.f32 %v1007, %v1008
    %v1010 = vand.u32 %v1009, 4294901760
    %1011 = vmatpush1.msra.mxu0 %v1010
    %1012 = vmatprep.subr.mxu0 0.0
    %v1013 = vand.u32 %v120, 4294901760
    %v1014 = vsub.f32 %v120, %v1013
    %v1015 = vand.u32 %v1014, 4294901760
    %v1016 = vsub.f32 %v1014, %v1015
    %v1017 = vand.u32 %v1016, 4294901760
    %1018 = vmatpush1.msra.mxu0 %v1017
    %1019 = vmatprep.subr.mxu0 0.0
    %v1020 = vand.u32 %v119, 4294901760
    %v1021 = vsub.f32 %v119, %v1020
    %v1022 = vand.u32 %v1021, 4294901760
    %v1023 = vsub.f32 %v1021, %v1022
    %v1024 = vand.u32 %v1023, 4294901760
    %1025 = vmatpush1.msra.mxu0 %v1024
    %1026 = vmatprep.subr.mxu0 0.0
    %v1027 = vand.u32 %v118, 4294901760
    %v1028 = vsub.f32 %v118, %v1027
    %v1029 = vand.u32 %v1028, 4294901760
    %v1030 = vsub.f32 %v1028, %v1029
    %v1031 = vand.u32 %v1030, 4294901760
    %1032 = vmatpush1.msra.mxu0 %v1031
    %1033 = vmatprep.subr.mxu0 0.0
    %1034 = vmatpush2.msra.mxu0 0.0
    %1035 = vmatprep.subr.mxu0 0.0
    %1036 = vmatpush2.msra.mxu0 0.0
    %1037 = vmatprep.subr.mxu0 0.0
    %1038 = vmatpush2.msra.mxu0 0.0
    %1039 = vmatprep.subr.mxu0 0.0
    %1040 = vmatpush2.msra.mxu0 0.0
    %1041 = vmatprep.subr.mxu0 0.0
    %1042 = vmatpush2.msra.mxu0 0.0
    %1043 = vmatprep.subr.mxu0 0.0
    %1044 = vmatpush2.msra.mxu0 0.0
    %1045 = vmatprep.subr.mxu0 0.0
    %1046 = vmatpush2.msra.mxu0 0.0
    %1047 = vmatprep.subr.mxu0 0.0
    %1048 = vmatpush2.msra.mxu0 0.0
    %1049 = vmatprep.subr.mxu0 0.0
    %1050 = vmatpush2.msra.mxu0 0.0
    %1051 = vmatprep.subr.mxu0 0.0
    %1052 = vmatpush2.msra.mxu0 0.0
    %1053 = vmatprep.subr.mxu0 0.0
    %1054 = vmatpush2.msra.mxu0 0.0
    %1055 = vmatprep.subr.mxu0 0.0
    %1056 = vmatpush2.msra.mxu0 0.0
    %1057 = vmatprep.subr.mxu0 0.0
    %1058 = vmatpush2.msra.mxu0 0.0
    %1059 = vmatprep.subr.mxu0 0.0
    %1060 = vmatpush2.msra.mxu0 0.0
    %1061 = vmatprep.subr.mxu0 0.0
    %1062 = vmatpush2.msra.mxu0 0.0
    %1063 = vmatprep.subr.mxu0 0.0
    %1064 = vmatpush2.msra.mxu0 0.0
    %1065 = vmatprep.mubr.f32.mxu0 0.0
    %v1066 = vand.u32 %v818, 4294901760
    %1067 = vmatmul.mubr.f32.gmra.mxu0 %v1066
    %v1068 = vpop.f32.mrf.mxu0
    %v1069 = vadd.f32 %v908, %v1068
    %v1070 = vpop.f32.mrf.mxu0
    %1071 = vmatprep.mubr.f32.mxu0 0.0
    %v1072 = vand.u32 %v819, 4294901760
    %1073 = vmatmul.mubr.f32.gmra.mxu0 %v1072
    %v1074 = vpop.f32.mrf.mxu0
    %v1075 = vadd.f32 %v918, %v1074
    %v1076 = vpop.f32.mrf.mxu0
    %1077 = vdwg.mxu0
    %1078 = vmatprep.subr.mxu0 0.0
    %v1079 = vand.u32 %v133, 4294901760
    %v1080 = vsub.f32 %v133, %v1079
    %1081 = vmatpush1.msra.mxu0 %v1080
    %1082 = vmatprep.subr.mxu0 0.0
    %v1083 = vand.u32 %v132, 4294901760
    %v1084 = vsub.f32 %v132, %v1083
    %1085 = vmatpush1.msra.mxu0 %v1084
    %1086 = vmatprep.subr.mxu0 0.0
    %v1087 = vand.u32 %v131, 4294901760
    %v1088 = vsub.f32 %v131, %v1087
    %1089 = vmatpush1.msra.mxu0 %v1088
    %1090 = vmatprep.subr.mxu0 0.0
    %v1091 = vand.u32 %v130, 4294901760
    %v1092 = vsub.f32 %v130, %v1091
    %1093 = vmatpush1.msra.mxu0 %v1092
    %1094 = vmatprep.subr.mxu0 0.0
    %v1095 = vand.u32 %v129, 4294901760
    %v1096 = vsub.f32 %v129, %v1095
    %1097 = vmatpush1.msra.mxu0 %v1096
    %1098 = vmatprep.subr.mxu0 0.0
    %v1099 = vand.u32 %v128, 4294901760
    %v1100 = vsub.f32 %v128, %v1099
    %1101 = vmatpush1.msra.mxu0 %v1100
    %1102 = vmatprep.subr.mxu0 0.0
    %v1103 = vand.u32 %v127, 4294901760
    %v1104 = vsub.f32 %v127, %v1103
    %1105 = vmatpush1.msra.mxu0 %v1104
    %1106 = vmatprep.subr.mxu0 0.0
    %v1107 = vand.u32 %v126, 4294901760
    %v1108 = vsub.f32 %v126, %v1107
    %1109 = vmatpush1.msra.mxu0 %v1108
    %1110 = vmatprep.subr.mxu0 0.0
    %v1111 = vand.u32 %v125, 4294901760
    %v1112 = vsub.f32 %v125, %v1111
    %1113 = vmatpush1.msra.mxu0 %v1112
    %1114 = vmatprep.subr.mxu0 0.0
    %v1115 = vand.u32 %v124, 4294901760
    %v1116 = vsub.f32 %v124, %v1115
    %1117 = vmatpush1.msra.mxu0 %v1116
    %1118 = vmatprep.subr.mxu0 0.0
    %v1119 = vand.u32 %v123, 4294901760
    %v1120 = vsub.f32 %v123, %v1119
    %1121 = vmatpush1.msra.mxu0 %v1120
    %1122 = vmatprep.subr.mxu0 0.0
    %v1123 = vand.u32 %v122, 4294901760
    %v1124 = vsub.f32 %v122, %v1123
    %1125 = vmatpush1.msra.mxu0 %v1124
    %1126 = vmatprep.subr.mxu0 0.0
    %v1127 = vand.u32 %v121, 4294901760
    %v1128 = vsub.f32 %v121, %v1127
    %1129 = vmatpush1.msra.mxu0 %v1128
    %1130 = vmatprep.subr.mxu0 0.0
    %v1131 = vand.u32 %v120, 4294901760
    %v1132 = vsub.f32 %v120, %v1131
    %1133 = vmatpush1.msra.mxu0 %v1132
    %1134 = vmatprep.subr.mxu0 0.0
    %v1135 = vand.u32 %v119, 4294901760
    %v1136 = vsub.f32 %v119, %v1135
    %1137 = vmatpush1.msra.mxu0 %v1136
    %1138 = vmatprep.subr.mxu0 0.0
    %v1139 = vand.u32 %v118, 4294901760
    %v1140 = vsub.f32 %v118, %v1139
    %1141 = vmatpush1.msra.mxu0 %v1140
    %1142 = vmatprep.subr.mxu0 0.0
    %1143 = vmatpush2.msra.mxu0 0.0
    %1144 = vmatprep.subr.mxu0 0.0
    %1145 = vmatpush2.msra.mxu0 0.0
    %1146 = vmatprep.subr.mxu0 0.0
    %1147 = vmatpush2.msra.mxu0 0.0
    %1148 = vmatprep.subr.mxu0 0.0
    %1149 = vmatpush2.msra.mxu0 0.0
    %1150 = vmatprep.subr.mxu0 0.0
    %1151 = vmatpush2.msra.mxu0 0.0
    %1152 = vmatprep.subr.mxu0 0.0
    %1153 = vmatpush2.msra.mxu0 0.0
    %1154 = vmatprep.subr.mxu0 0.0
    %1155 = vmatpush2.msra.mxu0 0.0
    %1156 = vmatprep.subr.mxu0 0.0
    %1157 = vmatpush2.msra.mxu0 0.0
    %1158 = vmatprep.subr.mxu0 0.0
    %1159 = vmatpush2.msra.mxu0 0.0
    %1160 = vmatprep.subr.mxu0 0.0
    %1161 = vmatpush2.msra.mxu0 0.0
    %1162 = vmatprep.subr.mxu0 0.0
    %1163 = vmatpush2.msra.mxu0 0.0
    %1164 = vmatprep.subr.mxu0 0.0
    %1165 = vmatpush2.msra.mxu0 0.0
    %1166 = vmatprep.subr.mxu0 0.0
    %1167 = vmatpush2.msra.mxu0 0.0
    %1168 = vmatprep.subr.mxu0 0.0
    %1169 = vmatpush2.msra.mxu0 0.0
    %1170 = vmatprep.subr.mxu0 0.0
    %1171 = vmatpush2.msra.mxu0 0.0
    %1172 = vmatprep.subr.mxu0 0.0
    %1173 = vmatpush2.msra.mxu0 0.0
    %1174 = vmatprep.mubr.f32.mxu0 0.0
    %v1175 = vand.u32 %v818, 4294901760
    %v1176 = vsub.f32 %v818, %v1175
    %1177 = vmatmul.mubr.f32.gmra.mxu0 %v1176
    %v1178 = vpop.f32.mrf.mxu0
    %v1179 = vadd.f32 %v1069, %v1178
    %v1180 = vpop.f32.mrf.mxu0
    %1181 = vmatprep.mubr.f32.mxu0 0.0
    %v1182 = vand.u32 %v819, 4294901760
    %v1183 = vsub.f32 %v819, %v1182
    %1184 = vmatmul.mubr.f32.gmra.mxu0 %v1183
    %v1185 = vpop.f32.mrf.mxu0
    %v1186 = vadd.f32 %v1075, %v1185
    %v1187 = vpop.f32.mrf.mxu0
    %1188 = vdwg.mxu0
    %1189 = vmatprep.subr.mxu0 0.0
    %v1190 = vand.u32 %v133, 4294901760
    %1191 = vmatpush1.msra.mxu0 %v1190
    %1192 = vmatprep.subr.mxu0 0.0
    %v1193 = vand.u32 %v132, 4294901760
    %1194 = vmatpush1.msra.mxu0 %v1193
    %1195 = vmatprep.subr.mxu0 0.0
    %v1196 = vand.u32 %v131, 4294901760
    %1197 = vmatpush1.msra.mxu0 %v1196
    %1198 = vmatprep.subr.mxu0 0.0
    %v1199 = vand.u32 %v130, 4294901760
    %1200 = vmatpush1.msra.mxu0 %v1199
    %1201 = vmatprep.subr.mxu0 0.0
    %v1202 = vand.u32 %v129, 4294901760
    %1203 = vmatpush1.msra.mxu0 %v1202
    %1204 = vmatprep.subr.mxu0 0.0
    %v1205 = vand.u32 %v128, 4294901760
    %1206 = vmatpush1.msra.mxu0 %v1205
    %1207 = vmatprep.subr.mxu0 0.0
    %v1208 = vand.u32 %v127, 4294901760
    %1209 = vmatpush1.msra.mxu0 %v1208
    %1210 = vmatprep.subr.mxu0 0.0
    %v1211 = vand.u32 %v126, 4294901760
    %1212 = vmatpush1.msra.mxu0 %v1211
    %1213 = vmatprep.subr.mxu0 0.0
    %v1214 = vand.u32 %v125, 4294901760
    %1215 = vmatpush1.msra.mxu0 %v1214
    %1216 = vmatprep.subr.mxu0 0.0
    %v1217 = vand.u32 %v124, 4294901760
    %1218 = vmatpush1.msra.mxu0 %v1217
    %1219 = vmatprep.subr.mxu0 0.0
    %v1220 = vand.u32 %v123, 4294901760
    %1221 = vmatpush1.msra.mxu0 %v1220
    %1222 = vmatprep.subr.mxu0 0.0
    %v1223 = vand.u32 %v122, 4294901760
    %1224 = vmatpush1.msra.mxu0 %v1223
    %1225 = vmatprep.subr.mxu0 0.0
    %v1226 = vand.u32 %v121, 4294901760
    %1227 = vmatpush1.msra.mxu0 %v1226
    %1228 = vmatprep.subr.mxu0 0.0
    %v1229 = vand.u32 %v120, 4294901760
    %1230 = vmatpush1.msra.mxu0 %v1229
    %1231 = vmatprep.subr.mxu0 0.0
    %v1232 = vand.u32 %v119, 4294901760
    %1233 = vmatpush1.msra.mxu0 %v1232
    %1234 = vmatprep.subr.mxu0 0.0
    %v1235 = vand.u32 %v118, 4294901760
    %1236 = vmatpush1.msra.mxu0 %v1235
    %1237 = vmatprep.subr.mxu0 0.0
    %1238 = vmatpush2.msra.mxu0 0.0
    %1239 = vmatprep.subr.mxu0 0.0
    %1240 = vmatpush2.msra.mxu0 0.0
    %1241 = vmatprep.subr.mxu0 0.0
    %1242 = vmatpush2.msra.mxu0 0.0
    %1243 = vmatprep.subr.mxu0 0.0
    %1244 = vmatpush2.msra.mxu0 0.0
    %1245 = vmatprep.subr.mxu0 0.0
    %1246 = vmatpush2.msra.mxu0 0.0
    %1247 = vmatprep.subr.mxu0 0.0
    %1248 = vmatpush2.msra.mxu0 0.0
    %1249 = vmatprep.subr.mxu0 0.0
    %1250 = vmatpush2.msra.mxu0 0.0
    %1251 = vmatprep.subr.mxu0 0.0
    %1252 = vmatpush2.msra.mxu0 0.0
    %1253 = vmatprep.subr.mxu0 0.0
    %1254 = vmatpush2.msra.mxu0 0.0
    %1255 = vmatprep.subr.mxu0 0.0
    %1256 = vmatpush2.msra.mxu0 0.0
    %1257 = vmatprep.subr.mxu0 0.0
    %1258 = vmatpush2.msra.mxu0 0.0
    %1259 = vmatprep.subr.mxu0 0.0
    %1260 = vmatpush2.msra.mxu0 0.0
    %1261 = vmatprep.subr.mxu0 0.0
    %1262 = vmatpush2.msra.mxu0 0.0
    %1263 = vmatprep.subr.mxu0 0.0
    %1264 = vmatpush2.msra.mxu0 0.0
    %1265 = vmatprep.subr.mxu0 0.0
    %1266 = vmatpush2.msra.mxu0 0.0
    %1267 = vmatprep.subr.mxu0 0.0
    %1268 = vmatpush2.msra.mxu0 0.0
    %1269 = vmatprep.mubr.f32.mxu0 0.0
    %v1270 = vand.u32 %v818, 4294901760
    %v1271 = vsub.f32 %v818, %v1270
    %v1272 = vand.u32 %v1271, 4294901760
    %1273 = vmatmul.mubr.f32.gmra.mxu0 %v1272
    %v1274 = vpop.f32.mrf.mxu0
    %v1275 = vadd.f32 %v1179, %v1274
    %v1276 = vpop.f32.mrf.mxu0
    %1277 = vmatprep.mubr.f32.mxu0 0.0
    %v1278 = vand.u32 %v819, 4294901760
    %v1279 = vsub.f32 %v819, %v1278
    %v1280 = vand.u32 %v1279, 4294901760
    %1281 = vmatmul.mubr.f32.gmra.mxu0 %v1280
    %v1282 = vpop.f32.mrf.mxu0
    %v1283 = vadd.f32 %v1186, %v1282
    %v1284 = vpop.f32.mrf.mxu0
    %1285 = vdwg.mxu0
    %1286 = vmatprep.subr.mxu0 0.0
    %v1287 = vand.u32 %v133, 4294901760
    %v1288 = vsub.f32 %v133, %v1287
    %v1289 = vand.u32 %v1288, 4294901760
    %1290 = vmatpush1.msra.mxu0 %v1289
    %1291 = vmatprep.subr.mxu0 0.0
    %v1292 = vand.u32 %v132, 4294901760
    %v1293 = vsub.f32 %v132, %v1292
    %v1294 = vand.u32 %v1293, 4294901760
    %1295 = vmatpush1.msra.mxu0 %v1294
    %1296 = vmatprep.subr.mxu0 0.0
    %v1297 = vand.u32 %v131, 4294901760
    %v1298 = vsub.f32 %v131, %v1297
    %v1299 = vand.u32 %v1298, 4294901760
    %1300 = vmatpush1.msra.mxu0 %v1299
    %1301 = vmatprep.subr.mxu0 0.0
    %v1302 = vand.u32 %v130, 4294901760
    %v1303 = vsub.f32 %v130, %v1302
    %v1304 = vand.u32 %v1303, 4294901760
    %1305 = vmatpush1.msra.mxu0 %v1304
    %1306 = vmatprep.subr.mxu0 0.0
    %v1307 = vand.u32 %v129, 4294901760
    %v1308 = vsub.f32 %v129, %v1307
    %v1309 = vand.u32 %v1308, 4294901760
    %1310 = vmatpush1.msra.mxu0 %v1309
    %1311 = vmatprep.subr.mxu0 0.0
    %v1312 = vand.u32 %v128, 4294901760
    %v1313 = vsub.f32 %v128, %v1312
    %v1314 = vand.u32 %v1313, 4294901760
    %1315 = vmatpush1.msra.mxu0 %v1314
    %1316 = vmatprep.subr.mxu0 0.0
    %v1317 = vand.u32 %v127, 4294901760
    %v1318 = vsub.f32 %v127, %v1317
    %v1319 = vand.u32 %v1318, 4294901760
    %1320 = vmatpush1.msra.mxu0 %v1319
    %1321 = vmatprep.subr.mxu0 0.0
    %v1322 = vand.u32 %v126, 4294901760
    %v1323 = vsub.f32 %v126, %v1322
    %v1324 = vand.u32 %v1323, 4294901760
    %1325 = vmatpush1.msra.mxu0 %v1324
    %1326 = vmatprep.subr.mxu0 0.0
    %v1327 = vand.u32 %v125, 4294901760
    %v1328 = vsub.f32 %v125, %v1327
    %v1329 = vand.u32 %v1328, 4294901760
    %1330 = vmatpush1.msra.mxu0 %v1329
    %1331 = vmatprep.subr.mxu0 0.0
    %v1332 = vand.u32 %v124, 4294901760
    %v1333 = vsub.f32 %v124, %v1332
    %v1334 = vand.u32 %v1333, 4294901760
    %1335 = vmatpush1.msra.mxu0 %v1334
    %1336 = vmatprep.subr.mxu0 0.0
    %v1337 = vand.u32 %v123, 4294901760
    %v1338 = vsub.f32 %v123, %v1337
    %v1339 = vand.u32 %v1338, 4294901760
    %1340 = vmatpush1.msra.mxu0 %v1339
    %1341 = vmatprep.subr.mxu0 0.0
    %v1342 = vand.u32 %v122, 4294901760
    %v1343 = vsub.f32 %v122, %v1342
    %v1344 = vand.u32 %v1343, 4294901760
    %1345 = vmatpush1.msra.mxu0 %v1344
    %1346 = vmatprep.subr.mxu0 0.0
    %v1347 = vand.u32 %v121, 4294901760
    %v1348 = vsub.f32 %v121, %v1347
    %v1349 = vand.u32 %v1348, 4294901760
    %1350 = vmatpush1.msra.mxu0 %v1349
    %1351 = vmatprep.subr.mxu0 0.0
    %v1352 = vand.u32 %v120, 4294901760
    %v1353 = vsub.f32 %v120, %v1352
    %v1354 = vand.u32 %v1353, 4294901760
    %1355 = vmatpush1.msra.mxu0 %v1354
    %1356 = vmatprep.subr.mxu0 0.0
    %v1357 = vand.u32 %v119, 4294901760
    %v1358 = vsub.f32 %v119, %v1357
    %v1359 = vand.u32 %v1358, 4294901760
    %1360 = vmatpush1.msra.mxu0 %v1359
    %1361 = vmatprep.subr.mxu0 0.0
    %v1362 = vand.u32 %v118, 4294901760
    %v1363 = vsub.f32 %v118, %v1362
    %v1364 = vand.u32 %v1363, 4294901760
    %1365 = vmatpush1.msra.mxu0 %v1364
    %1366 = vmatprep.subr.mxu0 0.0
    %1367 = vmatpush2.msra.mxu0 0.0
    %1368 = vmatprep.subr.mxu0 0.0
    %1369 = vmatpush2.msra.mxu0 0.0
    %1370 = vmatprep.subr.mxu0 0.0
    %1371 = vmatpush2.msra.mxu0 0.0
    %1372 = vmatprep.subr.mxu0 0.0
    %1373 = vmatpush2.msra.mxu0 0.0
    %1374 = vmatprep.subr.mxu0 0.0
    %1375 = vmatpush2.msra.mxu0 0.0
    %1376 = vmatprep.subr.mxu0 0.0
    %1377 = vmatpush2.msra.mxu0 0.0
    %1378 = vmatprep.subr.mxu0 0.0
    %1379 = vmatpush2.msra.mxu0 0.0
    %1380 = vmatprep.subr.mxu0 0.0
    %1381 = vmatpush2.msra.mxu0 0.0
    %1382 = vmatprep.subr.mxu0 0.0
    %1383 = vmatpush2.msra.mxu0 0.0
    %1384 = vmatprep.subr.mxu0 0.0
    %1385 = vmatpush2.msra.mxu0 0.0
    %1386 = vmatprep.subr.mxu0 0.0
    %1387 = vmatpush2.msra.mxu0 0.0
    %1388 = vmatprep.subr.mxu0 0.0
    %1389 = vmatpush2.msra.mxu0 0.0
    %1390 = vmatprep.subr.mxu0 0.0
    %1391 = vmatpush2.msra.mxu0 0.0
    %1392 = vmatprep.subr.mxu0 0.0
    %1393 = vmatpush2.msra.mxu0 0.0
    %1394 = vmatprep.subr.mxu0 0.0
    %1395 = vmatpush2.msra.mxu0 0.0
    %1396 = vmatprep.subr.mxu0 0.0
    %1397 = vmatpush2.msra.mxu0 0.0
    %1398 = vmatprep.mubr.f32.mxu0 0.0
    %v1399 = vand.u32 %v818, 4294901760
    %1400 = vmatmul.mubr.f32.gmra.mxu0 %v1399
    %v1401 = vpop.f32.mrf.mxu0
    %v1402 = vadd.f32 %v1275, %v1401
    %v1403 = vpop.f32.mrf.mxu0
    %1404 = vmatprep.mubr.f32.mxu0 0.0
    %v1405 = vand.u32 %v819, 4294901760
    %1406 = vmatmul.mubr.f32.gmra.mxu0 %v1405
    %v1407 = vpop.f32.mrf.mxu0
    %v1408 = vadd.f32 %v1283, %v1407
    %v1409 = vpop.f32.mrf.mxu0
    %1410 = vdwg.mxu0
    %1411 = vmatprep.subr.mxu0 0.0
    %v1412 = vand.u32 %v133, 4294901760
    %1413 = vmatpush1.msra.mxu0 %v1412
    %1414 = vmatprep.subr.mxu0 0.0
    %v1415 = vand.u32 %v132, 4294901760
    %1416 = vmatpush1.msra.mxu0 %v1415
    %1417 = vmatprep.subr.mxu0 0.0
    %v1418 = vand.u32 %v131, 4294901760
    %1419 = vmatpush1.msra.mxu0 %v1418
    %1420 = vmatprep.subr.mxu0 0.0
    %v1421 = vand.u32 %v130, 4294901760
    %1422 = vmatpush1.msra.mxu0 %v1421
    %1423 = vmatprep.subr.mxu0 0.0
    %v1424 = vand.u32 %v129, 4294901760
    %1425 = vmatpush1.msra.mxu0 %v1424
    %1426 = vmatprep.subr.mxu0 0.0
    %v1427 = vand.u32 %v128, 4294901760
    %1428 = vmatpush1.msra.mxu0 %v1427
    %1429 = vmatprep.subr.mxu0 0.0
    %v1430 = vand.u32 %v127, 4294901760
    %1431 = vmatpush1.msra.mxu0 %v1430
    %1432 = vmatprep.subr.mxu0 0.0
    %v1433 = vand.u32 %v126, 4294901760
    %1434 = vmatpush1.msra.mxu0 %v1433
    %1435 = vmatprep.subr.mxu0 0.0
    %v1436 = vand.u32 %v125, 4294901760
    %1437 = vmatpush1.msra.mxu0 %v1436
    %1438 = vmatprep.subr.mxu0 0.0
    %v1439 = vand.u32 %v124, 4294901760
    %1440 = vmatpush1.msra.mxu0 %v1439
    %1441 = vmatprep.subr.mxu0 0.0
    %v1442 = vand.u32 %v123, 4294901760
    %1443 = vmatpush1.msra.mxu0 %v1442
    %1444 = vmatprep.subr.mxu0 0.0
    %v1445 = vand.u32 %v122, 4294901760
    %1446 = vmatpush1.msra.mxu0 %v1445
    %1447 = vmatprep.subr.mxu0 0.0
    %v1448 = vand.u32 %v121, 4294901760
    %1449 = vmatpush1.msra.mxu0 %v1448
    %1450 = vmatprep.subr.mxu0 0.0
    %v1451 = vand.u32 %v120, 4294901760
    %1452 = vmatpush1.msra.mxu0 %v1451
    %1453 = vmatprep.subr.mxu0 0.0
    %v1454 = vand.u32 %v119, 4294901760
    %1455 = vmatpush1.msra.mxu0 %v1454
    %1456 = vmatprep.subr.mxu0 0.0
    %v1457 = vand.u32 %v118, 4294901760
    %1458 = vmatpush1.msra.mxu0 %v1457
    %1459 = vmatprep.subr.mxu0 0.0
    %1460 = vmatpush2.msra.mxu0 0.0
    %1461 = vmatprep.subr.mxu0 0.0
    %1462 = vmatpush2.msra.mxu0 0.0
    %1463 = vmatprep.subr.mxu0 0.0
    %1464 = vmatpush2.msra.mxu0 0.0
    %1465 = vmatprep.subr.mxu0 0.0
    %1466 = vmatpush2.msra.mxu0 0.0
    %1467 = vmatprep.subr.mxu0 0.0
    %1468 = vmatpush2.msra.mxu0 0.0
    %1469 = vmatprep.subr.mxu0 0.0
    %1470 = vmatpush2.msra.mxu0 0.0
    %1471 = vmatprep.subr.mxu0 0.0
    %1472 = vmatpush2.msra.mxu0 0.0
    %1473 = vmatprep.subr.mxu0 0.0
    %1474 = vmatpush2.msra.mxu0 0.0
    %1475 = vmatprep.subr.mxu0 0.0
    %1476 = vmatpush2.msra.mxu0 0.0
    %1477 = vmatprep.subr.mxu0 0.0
    %1478 = vmatpush2.msra.mxu0 0.0
    %1479 = vmatprep.subr.mxu0 0.0
    %1480 = vmatpush2.msra.mxu0 0.0
    %1481 = vmatprep.subr.mxu0 0.0
    %1482 = vmatpush2.msra.mxu0 0.0
    %1483 = vmatprep.subr.mxu0 0.0
    %1484 = vmatpush2.msra.mxu0 0.0
    %1485 = vmatprep.subr.mxu0 0.0
    %1486 = vmatpush2.msra.mxu0 0.0
    %1487 = vmatprep.subr.mxu0 0.0
    %1488 = vmatpush2.msra.mxu0 0.0
    %1489 = vmatprep.subr.mxu0 0.0
    %1490 = vmatpush2.msra.mxu0 0.0
    %1491 = vmatprep.mubr.f32.mxu0 0.0
    %v1492 = vand.u32 %v818, 4294901760
    %1493 = vmatmul.mubr.f32.gmra.mxu0 %v1492
    %v1494 = vpop.f32.mrf.mxu0
    %v1495 = vadd.f32 %v1402, %v1494
    %v1496 = vpop.f32.mrf.mxu0
    %1497 = vmatprep.mubr.f32.mxu0 0.0
    %v1498 = vand.u32 %v819, 4294901760
    %1499 = vmatmul.mubr.f32.gmra.mxu0 %v1498
    %v1500 = vpop.f32.mrf.mxu0
    %v1501 = vadd.f32 %v1408, %v1500
    %v1502 = vpop.f32.mrf.mxu0
    %1503 = vdwg.mxu0
    %v1504 = vmul.f32 %v809, %v809
    %v1505 = vmul.f32 %v815, %v815
    %v1506 = vmul.f32 %v1504, 0.0625
    %v1507 = vmul.f32 %v1505, 0.0625
    %v1508 = vsub.f32 %v1495, %v1506
    %v1509 = vsub.f32 %v1501, %v1507
    %v1510 = vmul.f32 %v1508, 0.06666667
    %v1511 = vmul.f32 %v1509, 0.06666667
    %vm1512 = vcmask 64512
    %1513 = vst.msk [vmem:[%s1] sm:$0xff] %vm1512, %v1510
    %1514 = vst.msk [vmem:[%s1 + $0x8] sm:$0xff] %vm1512, %v1511
    // Predicated region
    $region10: #{tpu_custom_call.1} parent=1 // pred_check
      _
    $region11: #{tpu_custom_call.1} parent=1 // pred_check_branch
      %1516 = sbr.rel (0) target = $region13
    $region12: #{tpu_custom_call.1} parent=1 // pred_region
      _
    $region13: #{tpu_custom_call.1} parent=1 // pred_fallthru
      _
    // Predicated region
    $region14: #{tpu_custom_call.1} parent=1 // pred_check
      _
    $region15: #{tpu_custom_call.1} parent=1 // pred_check_branch
      %1518 = sbr.rel (0) target = $region17
    $region16: #{tpu_custom_call.1} parent=1 // pred_region
      _
    $region17: #{tpu_custom_call.1} parent=1 // pred_fallthru
      _
    %1519 = vsyncpa [#allocation3], 1

</llo_original>
